<compile_context>
chip_gen: v7x
topology: tpu7x:2x2x1
jax: 0.10.0
libtpu: 0.0.40
codegen_flags: <defaults>
</compile_context>

<pallas_src>
import functools

import jax
import jax.numpy as jnp
from jax import lax
from jax.experimental import pallas as pl
from jax.experimental.pallas import tpu as pltpu


# ----------------------------- Pallas kernel ------------------------------- #
def _dconv2d_kernel(x_cur_ref, x_nxt_ref, w_ref, b_ref, o_ref, x2_ref, *,
                    shifts, t_hw):
    # x_cur_ref: (C_in, T)  f32   current tile of flattened zero-padded input
    # x_nxt_ref: (C_in, T)  f32   next tile (halo source for the tap shifts)
    # w_ref:     (KH*KW, C_out, C_in) f32  fused depthwise@pointwise tap weights
    # b_ref:     (C_out, 1) f32   fused bias
    # o_ref:     (C_out, T)       lane-dense output tile (T multiple of 128)
    # x2_ref:    (C_in, 2T) f32   VMEM scratch: current+next stitched together
    x2_ref[:, :t_hw] = x_cur_ref[...]
    x2_ref[:, t_hw:] = x_nxt_ref[...]

    c_out = o_ref.shape[0]
    acc = jnp.broadcast_to(b_ref[...], (c_out, t_hw))      # bias-initialized f32
    for t, s in enumerate(shifts):                         # static 9-tap loop
        acc = acc + jnp.dot(w_ref[t], x2_ref[:, s:s + t_hw],
                            preferred_element_type=jnp.float32)
    o_ref[...] = acc.astype(o_ref.dtype)


def _round_up(x, m):
    return (x + m - 1) // m * m


# ------------------------------- wrapper ------------------------------------ #
def dconv2d_pallas(x_nchw, w_dw, b_dw, w_pw, b_pw, *, groups=2, padding=1,
                   dilation=1, stride=1, hw_tile_cap=16384):
    N, C_in, H, W = x_nchw.shape
    C_mid, cin_g, KH, KW = w_dw.shape
    C_out = w_pw.shape[0]
    G = groups
    cmid_g = C_mid // G
    assert C_in % G == 0 and C_mid % G == 0 and cin_g == C_in // G

    H_pad, W_pad = H + 2 * padding, W + 2 * padding
    H_out = (H + 2 * padding - dilation * (KH - 1) - 1) // stride + 1
    W_out = (W + 2 * padding - dilation * (KW - 1) - 1) // stride + 1
    L = H_pad * W_pad

    # ---- fold grouped conv + 1x1 conv into per-tap (C_out, C_in) weights (f32) --
    w_dw_full = jnp.zeros((KH * KW, C_mid, C_in), jnp.float32)
    for kh in range(KH):
        for kw in range(KW):
            t = kh * KW + kw
            for g in range(G):
                blk = w_dw[g * cmid_g:(g + 1) * cmid_g, :, kh, kw]  # (cmid_g, cin_g)
                w_dw_full = w_dw_full.at[
                    t, g * cmid_g:(g + 1) * cmid_g,
                    g * cin_g:(g + 1) * cin_g].set(blk.astype(jnp.float32))
    w_pw_mat = w_pw[:, :, 0, 0].astype(jnp.float32)                 # (C_out, C_mid)
    w_taps = jnp.einsum('om,tmi->toi', w_pw_mat, w_dw_full)         # (KT, C_out, C_in)
    b_comb = (w_pw_mat @ b_dw.astype(jnp.float32)
              + b_pw.astype(jnp.float32)).reshape(C_out, 1)

    # ---- flattened zero-padded input (NO im2col; kernel builds taps itself) ----
    xp = jnp.pad(x_nchw, ((0, 0), (0, 0), (padding, padding), (padding, padding)))
    x_flat = xp.reshape(N, C_in, L).astype(jnp.float32)

    # flat-pixel shift of each kernel tap (valid output pixels never wrap rows)
    shifts = tuple(kh * dilation * W_pad + kw * dilation
                   for kh in range(KH) for kw in range(KW))
    s_max = shifts[-1]

    # dense (stride-1, padded-coordinate) output positions we must compute
    rows_needed = (H_out - 1) * stride + 1
    m_needed = rows_needed * W_pad

    # pixel tile: multiple of 128 (lane-dense), >= s_max (halo fits in the one
    # extra "next" tile), capped so double-buffered tiles stay small on v7x VMEM
    t_hw = min(_round_up(m_needed, 128), _round_up(hw_tile_cap, 128))
    t_hw = max(t_hw, _round_up(max(s_max, 1), 128))
    num_tiles = pl.cdiv(m_needed, t_hw)

    # v7x has 2 TensorCores — keep >=2 "parallel" grid steps when possible.
    if N == 1 and num_tiles == 1:
        half = max(_round_up(max(s_max, 1), 128),
                   _round_up(pl.cdiv(m_needed, 2), 128))
        if half < t_hw:
            t_hw = half
            num_tiles = pl.cdiv(m_needed, t_hw)
    assert s_max <= t_hw

    # input length: num_tiles blocks + 1 extra block so the "next" fetch of the
    # last tile is in range (and always >= L so no needed data is cut).
    target_len = max((num_tiles + 1) * t_hw, _round_up(L, t_hw))
    assert target_len >= L
    x_flat = jnp.pad(x_flat, ((0, 0), (0, 0), (0, target_len - L)))

    grid = (N, num_tiles)
    kernel = functools.partial(_dconv2d_kernel, shifts=shifts, t_hw=t_hw)

    out_flat = pl.pallas_call(
        kernel,
        out_shape=jax.ShapeDtypeStruct((N, C_out, num_tiles * t_hw), x_nchw.dtype),
        grid_spec=pltpu.PrefetchScalarGridSpec(
            num_scalar_prefetch=0,
            grid=grid,
            in_specs=[
                # batch dim squeezed out of the kernel refs (None).
                pl.BlockSpec((None, C_in, t_hw), lambda n, t: (n, 0, t)),      # cur
                pl.BlockSpec((None, C_in, t_hw), lambda n, t: (n, 0, t + 1)),  # next
                pl.BlockSpec((KH * KW, C_out, C_in), lambda n, t: (0, 0, 0)),  # W
                pl.BlockSpec((C_out, 1), lambda n, t: (0, 0)),                 # b
            ],
            out_specs=pl.BlockSpec((None, C_out, t_hw), lambda n, t: (n, 0, t)),
            scratch_shapes=[pltpu.VMEM((C_in, 2 * t_hw), jnp.float32)],
        ),
        compiler_params=pltpu.CompilerParams(
            dimension_semantics=("parallel", "parallel"),
            vmem_limit_bytes=32 * 1024 * 1024),
    )(x_flat, x_flat, w_taps, b_comb)

    # dense padded-coordinate output -> crop + stride-subsample back to NCHW
    y = out_flat[:, :, :m_needed].reshape(N, C_out, rows_needed, W_pad)
    y = y[:, :, ::stride, :(W_out - 1) * stride + 1:stride]
    return y


# --------------------------- pure-JAX reference ------------------------------ #
def dconv2d_ref(x, w_dw, b_dw, w_pw, b_pw, *, groups, padding, dilation, stride):
    y = lax.conv_general_dilated(
        x, w_dw, window_strides=(stride, stride),
        padding=((padding, padding), (padding, padding)),
        rhs_dilation=(dilation, dilation),
        dimension_numbers=("NCHW", "OIHW", "NCHW"),
        feature_group_count=groups)
    y = y + b_dw[None, :, None, None]
    z = lax.conv_general_dilated(
        y, w_pw, window_strides=(1, 1), padding="VALID",
        dimension_numbers=("NCHW", "OIHW", "NCHW"))
    return z + b_pw[None, :, None, None]


# ------------------------------- params -------------------------------------- #
def make_params(key, in_channels, out_channels, kernel_size, groups):
    kpl = (in_channels // out_channels if in_channels > out_channels
           else out_channels // in_channels)
    c_mid = in_channels * kpl
    k1, k2, k3, k4 = jax.random.split(key, 4)
    w_dw = 0.1 * jax.random.normal(
        k1, (c_mid, in_channels // groups, kernel_size, kernel_size), jnp.float32)
    b_dw = 0.1 * jax.random.normal(k2, (c_mid,), jnp.float32)
    w_pw = 0.1 * jax.random.normal(k3, (out_channels, c_mid, 1, 1), jnp.float32)
    b_pw = 0.1 * jax.random.normal(k4, (out_channels,), jnp.float32)
    return w_dw, b_dw, w_pw, b_pw


if __name__ == "__main__":
    # TODO(synk): the PyTorch defaults (in_channels=3) are incompatible with
    # groups=2 (would crash in PyTorch too); use in_channels=4, out_channels=8.
    N, C_in, H, W = 2, 4, 16, 16
    C_out, ksize, pad, dil, stride, groups = 8, 3, 1, 1, 1, 2

    key = jax.random.PRNGKey(0)
    kx, kp = jax.random.split(key)
    x = jax.random.normal(kx, (N, C_in, H, W), jnp.float32)
    w_dw, b_dw, w_pw, b_pw = make_params(kp, C_in, C_out, ksize, groups)

    fn = functools.partial(dconv2d_pallas, groups=groups, padding=pad,
                           dilation=dil, stride=stride)
    out = jax.jit(fn)(x, w_dw, b_dw, w_pw, b_pw)
    out = jax.block_until_ready(out)

    ref = dconv2d_ref(x, w_dw, b_dw, w_pw, b_pw, groups=groups, padding=pad,
                      dilation=dil, stride=stride)
    assert out.shape == ref.shape == (N, C_out, H, W)
    # f32 weights + f32 activations (MXU default precision) -> tight tolerance.
    assert jnp.allclose(out, ref, atol=2e-2, rtol=2e-2), float(
        jnp.max(jnp.abs(out - ref)))
    print("KERNEL_OK")
</pallas_src>

<mosaic_0001>
module attributes {stable_mosaic.version = 11 : i64} {
  func.func @_dconv2d_kernel(%arg0: i32, %arg1: i32, %arg2: memref<1x4x384xf32, #tpu.memory_space<vmem>>, %arg3: memref<1x4x384xf32, #tpu.memory_space<vmem>>, %arg4: memref<9x8x4xf32, #tpu.memory_space<vmem>>, %arg5: memref<8x1xf32, #tpu.memory_space<vmem>>, %arg6: memref<1x8x384xf32, #tpu.memory_space<vmem>>, %arg7: memref<4x768xf32, #tpu.memory_space<vmem>>) attributes {dimension_semantics = [#tpu.dimension_semantics<parallel>, #tpu.dimension_semantics<parallel>], iteration_bounds = array<i64: 2, 1>, scalar_prefetch = 0 : i64, scratch_operands = 1 : i64, tpu.core_type = #tpu.core_type<tc>, window_params = [{transform_indices = @transform_0, window_bounds = array<i64: 1, 4, 384>}, {transform_indices = @transform_1, window_bounds = array<i64: 1, 4, 384>}, {pipeline_mode = #tpu.pipeline_mode<synchronous>, transform_indices = @transform_2, window_bounds = array<i64: 9, 8, 4>}, {pipeline_mode = #tpu.pipeline_mode<synchronous>, transform_indices = @transform_3, window_bounds = array<i64: 8, 1>}, {transform_indices = @transform_4, window_bounds = array<i64: 1, 8, 384>}]} {
    %c0 = arith.constant 0 : index
    %c0_0 = arith.constant 0 : index
    %c0_1 = arith.constant 0 : index
    %0 = vector.load %arg2[%c0, %c0_0, %c0_1] : memref<1x4x384xf32, #tpu.memory_space<vmem>>, vector<1x4x384xf32>
    %1 = vector.shape_cast %0 : vector<1x4x384xf32> to vector<4x384xf32>
    %c0_2 = arith.constant 0 : index
    %c0_3 = arith.constant 0 : index
    %2 = vector.load %arg7[%c0_2, %c0_3] : memref<4x768xf32, #tpu.memory_space<vmem>>, vector<4x384xf32>
    tpu.vector_store %arg7[%c0_2, %c0_3], %1 {strides = array<i32>} : memref<4x768xf32, #tpu.memory_space<vmem>>, vector<4x384xf32>,
    %c0_4 = arith.constant 0 : index
    %c0_5 = arith.constant 0 : index
    %c0_6 = arith.constant 0 : index
    %3 = vector.load %arg3[%c0_4, %c0_5, %c0_6] : memref<1x4x384xf32, #tpu.memory_space<vmem>>, vector<1x4x384xf32>
    %4 = vector.shape_cast %3 : vector<1x4x384xf32> to vector<4x384xf32>
    %c0_7 = arith.constant 0 : index
    %c384 = arith.constant 384 : index
    %5 = vector.load %arg7[%c0_7, %c384] : memref<4x768xf32, #tpu.memory_space<vmem>>, vector<4x384xf32>
    tpu.vector_store %arg7[%c0_7, %c384], %4 {strides = array<i32>} : memref<4x768xf32, #tpu.memory_space<vmem>>, vector<4x384xf32>,
    %c0_8 = arith.constant 0 : index
    %c0_9 = arith.constant 0 : index
    %6 = vector.load %arg5[%c0_8, %c0_9] : memref<8x1xf32, #tpu.memory_space<vmem>>, vector<8x1xf32>
    %7 = vector.shape_cast %6 : vector<8x1xf32> to vector<8x1xf32>
    %8 = vector.broadcast %7 : vector<8x1xf32> to vector<8x384xf32>
    %c0_10 = arith.constant 0 : index
    %c0_11 = arith.constant 0 : index
    %c0_12 = arith.constant 0 : index
    %9 = vector.load %arg4[%c0_10, %c0_11, %c0_12] : memref<9x8x4xf32, #tpu.memory_space<vmem>>, vector<1x8x4xf32>
    %10 = vector.shape_cast %9 : vector<1x8x4xf32> to vector<8x4xf32>
    %c0_13 = arith.constant 0 : index
    %c0_14 = arith.constant 0 : index
    %11 = vector.load %arg7[%c0_13, %c0_14] : memref<4x768xf32, #tpu.memory_space<vmem>>, vector<4x384xf32>
    %cst = arith.constant dense<0.000000e+00> : vector<8x384xf32>
    %12 = tpu.matmul %10, %11, %cst {dimension_numbers = #tpu.dot_dimension_numbers<[1], [0], [0], [1], [0, 0, 1, 1], [], []>} : vector<8x4xf32>, vector<4x384xf32>, vector<8x384xf32> -> vector<8x384xf32>
    %13 = arith.addf %8, %12 : vector<8x384xf32>
    %c1 = arith.constant 1 : index
    %c0_15 = arith.constant 0 : index
    %c0_16 = arith.constant 0 : index
    %14 = vector.load %arg4[%c1, %c0_15, %c0_16] : memref<9x8x4xf32, #tpu.memory_space<vmem>>, vector<1x8x4xf32>
    %15 = vector.shape_cast %14 : vector<1x8x4xf32> to vector<8x4xf32>
    %c0_17 = arith.constant 0 : index
    %c1_18 = arith.constant 1 : index
    %16 = vector.load %arg7[%c0_17, %c1_18] : memref<4x768xf32, #tpu.memory_space<vmem>>, vector<4x384xf32>
    %cst_19 = arith.constant dense<0.000000e+00> : vector<8x384xf32>
    %17 = tpu.matmul %15, %16, %cst_19 {dimension_numbers = #tpu.dot_dimension_numbers<[1], [0], [0], [1], [0, 0, 1, 1], [], []>} : vector<8x4xf32>, vector<4x384xf32>, vector<8x384xf32> -> vector<8x384xf32>
    %18 = arith.addf %13, %17 : vector<8x384xf32>
    %c2 = arith.constant 2 : index
    %c0_20 = arith.constant 0 : index
    %c0_21 = arith.constant 0 : index
    %19 = vector.load %arg4[%c2, %c0_20, %c0_21] : memref<9x8x4xf32, #tpu.memory_space<vmem>>, vector<1x8x4xf32>
    %20 = vector.shape_cast %19 : vector<1x8x4xf32> to vector<8x4xf32>
    %c0_22 = arith.constant 0 : index
    %c2_23 = arith.constant 2 : index
    %21 = vector.load %arg7[%c0_22, %c2_23] : memref<4x768xf32, #tpu.memory_space<vmem>>, vector<4x384xf32>
    %cst_24 = arith.constant dense<0.000000e+00> : vector<8x384xf32>
    %22 = tpu.matmul %20, %21, %cst_24 {dimension_numbers = #tpu.dot_dimension_numbers<[1], [0], [0], [1], [0, 0, 1, 1], [], []>} : vector<8x4xf32>, vector<4x384xf32>, vector<8x384xf32> -> vector<8x384xf32>
    %23 = arith.addf %18, %22 : vector<8x384xf32>
    %c3 = arith.constant 3 : index
    %c0_25 = arith.constant 0 : index
    %c0_26 = arith.constant 0 : index
    %24 = vector.load %arg4[%c3, %c0_25, %c0_26] : memref<9x8x4xf32, #tpu.memory_space<vmem>>, vector<1x8x4xf32>
    %25 = vector.shape_cast %24 : vector<1x8x4xf32> to vector<8x4xf32>
    %c0_27 = arith.constant 0 : index
    %c18 = arith.constant 18 : index
    %26 = vector.load %arg7[%c0_27, %c18] : memref<4x768xf32, #tpu.memory_space<vmem>>, vector<4x384xf32>
    %cst_28 = arith.constant dense<0.000000e+00> : vector<8x384xf32>
    %27 = tpu.matmul %25, %26, %cst_28 {dimension_numbers = #tpu.dot_dimension_numbers<[1], [0], [0], [1], [0, 0, 1, 1], [], []>} : vector<8x4xf32>, vector<4x384xf32>, vector<8x384xf32> -> vector<8x384xf32>
    %28 = arith.addf %23, %27 : vector<8x384xf32>
    %c4 = arith.constant 4 : index
    %c0_29 = arith.constant 0 : index
    %c0_30 = arith.constant 0 : index
    %29 = vector.load %arg4[%c4, %c0_29, %c0_30] : memref<9x8x4xf32, #tpu.memory_space<vmem>>, vector<1x8x4xf32>
    %30 = vector.shape_cast %29 : vector<1x8x4xf32> to vector<8x4xf32>
    %c0_31 = arith.constant 0 : index
    %c19 = arith.constant 19 : index
    %31 = vector.load %arg7[%c0_31, %c19] : memref<4x768xf32, #tpu.memory_space<vmem>>, vector<4x384xf32>
    %cst_32 = arith.constant dense<0.000000e+00> : vector<8x384xf32>
    %32 = tpu.matmul %30, %31, %cst_32 {dimension_numbers = #tpu.dot_dimension_numbers<[1], [0], [0], [1], [0, 0, 1, 1], [], []>} : vector<8x4xf32>, vector<4x384xf32>, vector<8x384xf32> -> vector<8x384xf32>
    %33 = arith.addf %28, %32 : vector<8x384xf32>
    %c5 = arith.constant 5 : index
    %c0_33 = arith.constant 0 : index
    %c0_34 = arith.constant 0 : index
    %34 = vector.load %arg4[%c5, %c0_33, %c0_34] : memref<9x8x4xf32, #tpu.memory_space<vmem>>, vector<1x8x4xf32>
    %35 = vector.shape_cast %34 : vector<1x8x4xf32> to vector<8x4xf32>
    %c0_35 = arith.constant 0 : index
    %c20 = arith.constant 20 : index
    %36 = vector.load %arg7[%c0_35, %c20] : memref<4x768xf32, #tpu.memory_space<vmem>>, vector<4x384xf32>
    %cst_36 = arith.constant dense<0.000000e+00> : vector<8x384xf32>
    %37 = tpu.matmul %35, %36, %cst_36 {dimension_numbers = #tpu.dot_dimension_numbers<[1], [0], [0], [1], [0, 0, 1, 1], [], []>} : vector<8x4xf32>, vector<4x384xf32>, vector<8x384xf32> -> vector<8x384xf32>
    %38 = arith.addf %33, %37 : vector<8x384xf32>
    %c6 = arith.constant 6 : index
    %c0_37 = arith.constant 0 : index
    %c0_38 = arith.constant 0 : index
    %39 = vector.load %arg4[%c6, %c0_37, %c0_38] : memref<9x8x4xf32, #tpu.memory_space<vmem>>, vector<1x8x4xf32>
    %40 = vector.shape_cast %39 : vector<1x8x4xf32> to vector<8x4xf32>
    %c0_39 = arith.constant 0 : index
    %c36 = arith.constant 36 : index
    %41 = vector.load %arg7[%c0_39, %c36] : memref<4x768xf32, #tpu.memory_space<vmem>>, vector<4x384xf32>
    %cst_40 = arith.constant dense<0.000000e+00> : vector<8x384xf32>
    %42 = tpu.matmul %40, %41, %cst_40 {dimension_numbers = #tpu.dot_dimension_numbers<[1], [0], [0], [1], [0, 0, 1, 1], [], []>} : vector<8x4xf32>, vector<4x384xf32>, vector<8x384xf32> -> vector<8x384xf32>
    %43 = arith.addf %38, %42 : vector<8x384xf32>
    %c7 = arith.constant 7 : index
    %c0_41 = arith.constant 0 : index
    %c0_42 = arith.constant 0 : index
    %44 = vector.load %arg4[%c7, %c0_41, %c0_42] : memref<9x8x4xf32, #tpu.memory_space<vmem>>, vector<1x8x4xf32>
    %45 = vector.shape_cast %44 : vector<1x8x4xf32> to vector<8x4xf32>
    %c0_43 = arith.constant 0 : index
    %c37 = arith.constant 37 : index
    %46 = vector.load %arg7[%c0_43, %c37] : memref<4x768xf32, #tpu.memory_space<vmem>>, vector<4x384xf32>
    %cst_44 = arith.constant dense<0.000000e+00> : vector<8x384xf32>
    %47 = tpu.matmul %45, %46, %cst_44 {dimension_numbers = #tpu.dot_dimension_numbers<[1], [0], [0], [1], [0, 0, 1, 1], [], []>} : vector<8x4xf32>, vector<4x384xf32>, vector<8x384xf32> -> vector<8x384xf32>
    %48 = arith.addf %43, %47 : vector<8x384xf32>
    %c8 = arith.constant 8 : index
    %c0_45 = arith.constant 0 : index
    %c0_46 = arith.constant 0 : index
    %49 = vector.load %arg4[%c8, %c0_45, %c0_46] : memref<9x8x4xf32, #tpu.memory_space<vmem>>, vector<1x8x4xf32>
    %50 = vector.shape_cast %49 : vector<1x8x4xf32> to vector<8x4xf32>
    %c0_47 = arith.constant 0 : index
    %c38 = arith.constant 38 : index
    %51 = vector.load %arg7[%c0_47, %c38] : memref<4x768xf32, #tpu.memory_space<vmem>>, vector<4x384xf32>
    %cst_48 = arith.constant dense<0.000000e+00> : vector<8x384xf32>
    %52 = tpu.matmul %50, %51, %cst_48 {dimension_numbers = #tpu.dot_dimension_numbers<[1], [0], [0], [1], [0, 0, 1, 1], [], []>} : vector<8x4xf32>, vector<4x384xf32>, vector<8x384xf32> -> vector<8x384xf32>
    %53 = arith.addf %48, %52 : vector<8x384xf32>
    %c0_49 = arith.constant 0 : index
    %c0_50 = arith.constant 0 : index
    %c0_51 = arith.constant 0 : index
    %54 = vector.load %arg6[%c0_49, %c0_50, %c0_51] : memref<1x8x384xf32, #tpu.memory_space<vmem>>, vector<1x8x384xf32>
    %55 = vector.shape_cast %54 : vector<1x8x384xf32> to vector<8x384xf32>
    %56 = vector.shape_cast %53 : vector<8x384xf32> to vector<1x8x384xf32>
    tpu.vector_store %arg6[%c0_49, %c0_50, %c0_51], %56 {strides = array<i32>} : memref<1x8x384xf32, #tpu.memory_space<vmem>>, vector<1x8x384xf32>,
    return
  }
  func.func @transform_0(%arg0: i32, %arg1: i32) -> (i32, i32, i32) {
    %c0_i32 = arith.constant 0 : i32
    %c0_i32_0 = arith.constant 0 : i32
    return %arg0, %c0_i32, %arg1 : i32, i32, i32
  }
  func.func @transform_1(%arg0: i32, %arg1: i32) -> (i32, i32, i32) {
    %c1_i32 = arith.constant 1 : i32
    %0 = arith.addi %arg1, %c1_i32 : i32
    %c0_i32 = arith.constant 0 : i32
    %c0_i32_0 = arith.constant 0 : i32
    return %arg0, %c0_i32, %0 : i32, i32, i32
  }
  func.func @transform_2(%arg0: i32, %arg1: i32) -> (i32, i32, i32) {
    %c0_i32 = arith.constant 0 : i32
    %c0_i32_0 = arith.constant 0 : i32
    %c0_i32_1 = arith.constant 0 : i32
    %c0_i32_2 = arith.constant 0 : i32
    return %c0_i32, %c0_i32_0, %c0_i32_1 : i32, i32, i32
  }
  func.func @transform_3(%arg0: i32, %arg1: i32) -> (i32, i32) {
    %c0_i32 = arith.constant 0 : i32
    %c0_i32_0 = arith.constant 0 : i32
    %c0_i32_1 = arith.constant 0 : i32
    return %c0_i32, %c0_i32_0 : i32, i32
  }
  func.func @transform_4(%arg0: i32, %arg1: i32) -> (i32, i32, i32) {
    %c0_i32 = arith.constant 0 : i32
    %c0_i32_0 = arith.constant 0 : i32
    return %arg0, %c0_i32, %arg1 : i32, i32, i32
  }
}

</mosaic_0001>

<llo_original>
// kernel: dconv2d_pallas.1
$region0: #{dconv2d_pallas.1}
  #allocation0 [shape = 'u32[]', space=smem, size = 0x4, offset = 0x4, fixed_abs, tag = 'smem constant byte address 0x4 - core index']
  #allocation1 [shape = 'u32[144,128]{1,0:T(1,128)}', space=vmem, size = 0x12000, scoped, tag = 'internal scratch']
  #allocation2 [shape = 'f32[4,768]{1,0:T(4,128)}', space=vmem, size = 0x3000, scoped, tag = 'scratch operand']
  %s0 = inlined_call_operand.vmem [shape: f32[2,4,768], index: 0, kind: input, shape index: {}, may-alias: {0,1}]
  %s1 = inlined_call_operand.vmem [shape: f32[2,4,768], index: 1, kind: input, shape index: {}, may-alias: {0,1}]
  %s2 = inlined_call_operand.vmem [shape: f32[9,8,4], index: 2, kind: input, shape index: {}]
  %s3 = inlined_call_operand.vmem [shape: f32[8,1], index: 3, kind: input, shape index: {}]
  %s4 = inlined_call_operand.vmem [shape: f32[2,8,384], index: 4, kind: output, shape index: {}]
  %s5 = sld [smem:[#allocation0]]
  $region49: #{dconv2d_pallas.1} parent=0
    _
  %s7 = ssub.s32 1, %s5
  %s8 = scalar_select 0, %s7, %s5
  loop: start=0, step=1, limit=4
  $region2: #{dconv2d_pallas.1} parent=0 // loop_pre_header
    _
  $region3: #{dconv2d_pallas.1} parent=0 // loop_header
    %s10 = sphi 0, %s14
    %p11 = scmp.ge.s32.totalorder %s10, 4
    %s17 = sphi 0, %s29
    %s18 = sphi 0, %s25
    %s19 = sphi 0, %s17
    %s20 = sphi 0, %s18
    %s21 = sphi 0, %s19
    %s22 = sphi 0, %s20
    %s34 = sphi 0, %s36
    %s37 = sphi 0, %s34
    %s38 = sphi 0, %s37
    %s54 = sphi 0, %s38
    %s64 = sphi 0, %s66
    %s67 = sphi 0, %s64
    %s68 = sphi 0, %s67
    %s84 = sphi 0, %s68
    %s88 = sphi 0, %s88
    %s90 = sphi 0, %s88
    %s91 = sphi 0, %s90
    %s105 = sphi 0, %s91
    %s109 = sphi 0, %s109
    %s111 = sphi 0, %s109
    %s112 = sphi 0, %s111
    %s126 = sphi 0, %s112
    %s134 = sphi 0, %s136
    %s137 = sphi 0, %s134
    %s138 = sphi 0, %s137
    %s154 = sphi 0, %s138
  $region4: #{dconv2d_pallas.1} parent=0 // loop_header_branch
    %13 = sbr.rel (%p11) target = $region8
  $region5: #{dconv2d_pallas.1} parent=0 // loop_body
    %s15 = ssub.s32 %s10, 1
    %s16 = ssub.s32 %s10, 2
    %s23 = sadd.s32 1, %s18
    %p24 = scmp.ge.s32.totalorder %s23, 1
    %s25 = scalar_select %p24, 0, %s23
    %s26 = sadd.s32 1, %s17
    %s27 = scalar_select %p24, %s26, %s17
    %p28 = scmp.ge.s32.totalorder %s27, 2
    %s29 = scalar_select %p28, 0, %s27
    %s30 = ssub.s32 %s17, %s29
    %s31 = ssub.s32 %s18, %s25
    %s32 = sor.u32 %s30, %s31
    %p33 = scmp.eq.s32.totalorder %s32, 0
    %s35 = sadd.s32 %s34, 1
    %s36 = scalar_select %p33, %s34, %s35
    %p39 = pneg %p33
    %p40 = scmp.eq.s32.totalorder %s10, 1
    %p41 = por %p39, %p40
    %p42 = scmp.ne.s32.totalorder %s34, %s37
    %p43 = scmp.eq.s32.totalorder %s10, 0
    %p44 = por %p42, %p43
    %p45 = scmp.ne.s32.totalorder %s34, %s37
    %p46 = scmp.eq.s32.totalorder %s15, 1
    %p47 = por %p45, %p46
    %p48 = scmp.ne.s32.totalorder %s37, %s38
    %p49 = scmp.eq.s32.totalorder %s15, 0
    %p50 = por %p48, %p49
    %p51 = scmp.ne.s32.totalorder %s37, %s38
    %p52 = scmp.eq.s32.totalorder %s16, 1
    %p53 = por %p51, %p52
    %p55 = scmp.ne.s32.totalorder %s38, %s54
    %p56 = scmp.eq.s32.totalorder %s16, 0
    %p57 = por %p55, %p56
    %s58 = sadd.s32 %s18, 1
    %s59 = sadd.s32 %s25, 1
    %s60 = ssub.s32 %s17, %s29
    %s61 = ssub.s32 %s58, %s59
    %s62 = sor.u32 %s60, %s61
    %p63 = scmp.eq.s32.totalorder %s62, 0
    %s65 = sadd.s32 %s64, 1
    %s66 = scalar_select %p63, %s64, %s65
    %p69 = pneg %p63
    %p70 = scmp.eq.s32.totalorder %s10, 1
    %p71 = por %p69, %p70
    %p72 = scmp.ne.s32.totalorder %s64, %s67
    %p73 = scmp.eq.s32.totalorder %s10, 0
    %p74 = por %p72, %p73
    %p75 = scmp.ne.s32.totalorder %s64, %s67
    %p76 = scmp.eq.s32.totalorder %s15, 1
    %p77 = por %p75, %p76
    %p78 = scmp.ne.s32.totalorder %s67, %s68
    %p79 = scmp.eq.s32.totalorder %s15, 0
    %p80 = por %p78, %p79
    %p81 = scmp.ne.s32.totalorder %s67, %s68
    %p82 = scmp.eq.s32.totalorder %s16, 1
    %p83 = por %p81, %p82
    %p85 = scmp.ne.s32.totalorder %s68, %s84
    %p86 = scmp.eq.s32.totalorder %s16, 0
    %p87 = por %p85, %p86
    %s89 = sadd.s32 %s88, 1
    %p92 = scmp.eq.s32.totalorder %s10, 1
    %p93 = scmp.ne.s32.totalorder %s88, %s90
    %p94 = scmp.eq.s32.totalorder %s10, 0
    %p95 = por %p93, %p94
    %p96 = scmp.ne.s32.totalorder %s88, %s90
    %p97 = scmp.eq.s32.totalorder %s15, 1
    %p98 = por %p96, %p97
    %p99 = scmp.ne.s32.totalorder %s90, %s91
    %p100 = scmp.eq.s32.totalorder %s15, 0
    %p101 = por %p99, %p100
    %p102 = scmp.ne.s32.totalorder %s90, %s91
    %p103 = scmp.eq.s32.totalorder %s16, 1
    %p104 = por %p102, %p103
    %p106 = scmp.ne.s32.totalorder %s91, %s105
    %p107 = scmp.eq.s32.totalorder %s16, 0
    %p108 = por %p106, %p107
    %s110 = sadd.s32 %s109, 1
    %p113 = scmp.eq.s32.totalorder %s10, 1
    %p114 = scmp.ne.s32.totalorder %s109, %s111
    %p115 = scmp.eq.s32.totalorder %s10, 0
    %p116 = por %p114, %p115
    %p117 = scmp.ne.s32.totalorder %s109, %s111
    %p118 = scmp.eq.s32.totalorder %s15, 1
    %p119 = por %p117, %p118
    %p120 = scmp.ne.s32.totalorder %s111, %s112
    %p121 = scmp.eq.s32.totalorder %s15, 0
    %p122 = por %p120, %p121
    %p123 = scmp.ne.s32.totalorder %s111, %s112
    %p124 = scmp.eq.s32.totalorder %s16, 1
    %p125 = por %p123, %p124
    %p127 = scmp.ne.s32.totalorder %s112, %s126
    %p128 = scmp.eq.s32.totalorder %s16, 0
    %p129 = por %p127, %p128
    %s130 = ssub.s32 %s17, %s29
    %s131 = ssub.s32 %s18, %s25
    %s132 = sor.u32 %s130, %s131
    %p133 = scmp.eq.s32.totalorder %s132, 0
    %s135 = sadd.s32 %s134, 1
    %s136 = scalar_select %p133, %s134, %s135
    %p139 = pneg %p133
    %p140 = scmp.eq.s32.totalorder %s10, 1
    %p141 = por %p139, %p140
    %p142 = scmp.ne.s32.totalorder %s134, %s137
    %p143 = scmp.eq.s32.totalorder %s10, 0
    %p144 = por %p142, %p143
    %p145 = scmp.ne.s32.totalorder %s134, %s137
    %p146 = scmp.eq.s32.totalorder %s15, 1
    %p147 = por %p145, %p146
    %p148 = scmp.ne.s32.totalorder %s137, %s138
    %p149 = scmp.eq.s32.totalorder %s15, 0
    %p150 = por %p148, %p149
    %p151 = scmp.ne.s32.totalorder %s137, %s138
    %p152 = scmp.eq.s32.totalorder %s16, 1
    %p153 = por %p151, %p152
    %p155 = scmp.ne.s32.totalorder %s138, %s154
    %p156 = scmp.eq.s32.totalorder %s16, 0
    %p157 = por %p155, %p156
    %p158 = scmp.le.s32.totalorder 1, %s10
    %p159 = scmp.lt.s32.totalorder %s10, 3
    %p160 = pnand %p158, %p159
    %p161 = pneg %p160
    // Predicated region
    $region9: #{dconv2d_pallas.1} parent=5 // pred_check
      _
    $region10: #{dconv2d_pallas.1} parent=5 // pred_check_branch
      %163 = sbr.rel (%p160) target = $region12
    $region11: #{dconv2d_pallas.1} parent=5 // pred_region
      %s164 = ssub.s32 %s10, 1
      // Predicated region
      $region13: #{dconv2d_pallas.1} parent=11 // pred_check
        %p165 = pneg %p101
      $region14: #{dconv2d_pallas.1} parent=11 // pred_check_branch
        %167 = sbr.rel (%p165) target = $region16
      $region15: #{dconv2d_pallas.1} parent=11 // pred_region
        _
      $region16: #{dconv2d_pallas.1} parent=11 // pred_fallthru
        _
      // Predicated region
      $region17: #{dconv2d_pallas.1} parent=11 // pred_check
        %p168 = pneg %p122
      $region18: #{dconv2d_pallas.1} parent=11 // pred_check_branch
        %170 = sbr.rel (%p168) target = $region20
      $region19: #{dconv2d_pallas.1} parent=11 // pred_region
        _
      $region20: #{dconv2d_pallas.1} parent=11 // pred_fallthru
        _
    $region12: #{dconv2d_pallas.1} parent=5 // pred_fallthru
      _
    %p171 = scmp.lt.s32.totalorder %s10, 2
    // Predicated region
    $region21: #{dconv2d_pallas.1} parent=5 // pred_check
      %p172 = pneg %p171
    $region22: #{dconv2d_pallas.1} parent=5 // pred_check_branch
      %174 = sbr.rel (%p172) target = $region24
    $region23: #{dconv2d_pallas.1} parent=5 // pred_region
      // Predicated region
      $region25: #{dconv2d_pallas.1} parent=23 // pred_check
        %p175 = pneg %p44
      $region26: #{dconv2d_pallas.1} parent=23 // pred_check_branch
        %177 = sbr.rel (%p175) target = $region28
      $region27: #{dconv2d_pallas.1} parent=23 // pred_region
        %s178 = smul.u32 3, %s18
        %p179 = scmp.lt.s32.totalorder %s17, 1
        %s180 = scalar_select %p179, %s17, 1
        %p181 = scmp.lt.s32.totalorder %s178, 5
        %s182 = scalar_select %p181, %s178, 5
        %s183 = smul.addr %s180, 6
        %s184 = sadd.s32 %s182, %s183
        %s185 = smul.addr %s184, 4
        %s186 = scalar_lea.vmem %s0, %s185
        %s187 = smul.u32 3, %s18
      $region28: #{dconv2d_pallas.1} parent=23 // pred_fallthru
        _
      // Predicated region
      $region29: #{dconv2d_pallas.1} parent=23 // pred_check
        %p188 = pneg %p74
      $region30: #{dconv2d_pallas.1} parent=23 // pred_check_branch
        %190 = sbr.rel (%p188) target = $region32
      $region31: #{dconv2d_pallas.1} parent=23 // pred_region
        %s191 = sadd.s32 %s18, 1
        %s192 = smul.u32 3, %s191
        %p193 = scmp.lt.s32.totalorder %s17, 1
        %s194 = scalar_select %p193, %s17, 1
        %p195 = scmp.lt.s32.totalorder %s192, 5
        %s196 = scalar_select %p195, %s192, 5
        %s197 = smul.addr %s194, 6
        %s198 = sadd.s32 %s196, %s197
        %s199 = smul.addr %s198, 4
        %s200 = scalar_lea.vmem %s1, %s199
        %s201 = sadd.s32 %s18, 1
        %s202 = smul.u32 3, %s201
      $region32: #{dconv2d_pallas.1} parent=23 // pred_fallthru
        _
    $region24: #{dconv2d_pallas.1} parent=5 // pred_fallthru
      _
    %p203 = scmp.le.s32.totalorder 1, %s10
    %p204 = scmp.lt.s32.totalorder %s10, 3
    %p205 = pnand %p203, %p204
    %p206 = pneg %p205
    // Predicated region
    $region33: #{dconv2d_pallas.1} parent=5 // pred_check
      _
    $region34: #{dconv2d_pallas.1} parent=5 // pred_check_branch
      %208 = sbr.rel (%p205) target = $region36
    $region35: #{dconv2d_pallas.1} parent=5 // pred_region
      %s209 = ssub.s32 %s10, 1
      %s210 = smul.u32 3, %s20
      %p211 = scmp.lt.s32.totalorder %s19, 1
      %s212 = scalar_select %p211, %s19, 1
      %p213 = scmp.lt.s32.totalorder %s210, 5
      %s214 = scalar_select %p213, %s210, 5
      %s215 = smul.addr %s212, 6
      %s216 = sadd.s32 %s214, %s215
      %s217 = smul.addr %s216, 4
      %s218 = scalar_lea.vmem %s0, %s217
      %p219 = pneg %p50
      %p220 = pneg %p47
      %s221 = sadd.s32 %s20, 1
      %s222 = smul.u32 3, %s221
      %p223 = scmp.lt.s32.totalorder %s19, 1
      %s224 = scalar_select %p223, %s19, 1
      %p225 = scmp.lt.s32.totalorder %s222, 5
      %s226 = scalar_select %p225, %s222, 5
      %s227 = smul.addr %s224, 6
      %s228 = sadd.s32 %s226, %s227
      %s229 = smul.addr %s228, 4
      %s230 = scalar_lea.vmem %s1, %s229
      %p231 = pneg %p80
      %p232 = pneg %p77
      %p233 = pneg %p101
      %p234 = pneg %p98
      %p235 = pneg %p122
      %p236 = pneg %p119
      %p237 = pneg %p150
      %p238 = pneg %p147
      %s239 = smul.u32 3, %s20
      %p240 = scmp.lt.s32.totalorder %s19, 1
      %s241 = scalar_select %p240, %s19, 1
      %p242 = scmp.lt.s32.totalorder %s239, 2
      %s243 = scalar_select %p242, %s239, 2
      %s244 = smul.addr %s241, 3
      %s245 = sadd.s32 %s243, %s244
      %s246 = smul.addr %s245, 8
      %s247 = scalar_lea.vmem %s4, %s246
      %s248 = smul.u32 3, %s20
      %p249 = scmp.lt.s32.totalorder %s19, 1
      %s250 = scalar_select %p249, %s19, 1
      %p251 = scmp.lt.s32.totalorder %s248, 5
      %s252 = scalar_select %p251, %s248, 5
      %s253 = smul.addr %s250, 6
      %s254 = sadd.s32 %s252, %s253
      %s255 = smul.addr %s254, 4
      %s256 = scalar_lea.vmem %s0, %s255
      %s257 = smul.u32 3, %s20
      %s258 = sadd.s32 %s20, 1
      %s259 = smul.u32 3, %s258
      %p260 = scmp.lt.s32.totalorder %s19, 1
      %s261 = scalar_select %p260, %s19, 1
      %p262 = scmp.lt.s32.totalorder %s259, 5
      %s263 = scalar_select %p262, %s259, 5
      %s264 = smul.addr %s261, 6
      %s265 = sadd.s32 %s263, %s264
      %s266 = smul.addr %s265, 4
      %s267 = scalar_lea.vmem %s1, %s266
      %s268 = sadd.s32 %s20, 1
      %s269 = smul.u32 3, %s268
      %s270 = smul.u32 3, %s20
      %p271 = scmp.lt.s32.totalorder %s19, 1
      %s272 = scalar_select %p271, %s19, 1
      %p273 = scmp.lt.s32.totalorder %s270, 2
      %s274 = scalar_select %p273, %s270, 2
      %s275 = smul.addr %s272, 3
      %s276 = sadd.s32 %s274, %s275
      %s277 = smul.addr %s276, 8
      %s278 = scalar_lea.vmem %s4, %s277
      %s279 = smul.u32 3, %s20
      %v280 = vld [vmem:[%s256] sm:$0xff]
      %v281 = vld [vmem:[%s256 + $0x8] sm:$0xf]
      %282 = vst [vmem:[#allocation2] sm:$0xff] %v280
      %283 = vst [vmem:[#allocation2 + $0x8] sm:$0xf] %v281
      %v284 = vld [vmem:[%s267] sm:$0xff]
      %v285 = vld [vmem:[%s267 + $0x8] sm:$0xf]
      %286 = vst [vmem:[#allocation2 + $0xc] sm:$0xff] %v284
      %287 = vst [vmem:[#allocation2 + $0x14] sm:$0xf] %v285
      %v288 = vld [vmem:[%s3] sm:$0xff]
      %290 = vset.pattern.permute.xlu0 0
      %291 = vperm.xlu0 %290, %v288
      %v292 = vpop.permute.xlu0 %291
      %v294 = vld [vmem:[%s2] sm:$0xff]
      %v295 = vld [vmem:[#allocation2] sm:$0xff]
      %v296 = vld [vmem:[#allocation2 + $0x8] sm:$0xf]
      %v299 = vcombine.high %v295, %v295
      %vm300 = vcmask 31744
      %v302 = vsel %vm300, %v294, 0
      %vm304 = vcmask 1043456
      %v305 = vsel %vm304, %v295, 0
      %v307 = vsel %vm304, %v299, 0
      %v309 = vsel %vm304, %v296, 0
      %311 = vmatprep.subr.mxu0 %v307
      %312 = vmatpush1.msra.mxu0 %v305
      %313 = vmatprep.subr.mxu0 0.0
      %314 = vmatpush1.msra.mxu0 0.0
      %315 = vmatprep.subr.mxu0 0.0
      %316 = vmatpush1.msra.mxu0 0.0
      %317 = vmatprep.subr.mxu0 0.0
      %318 = vmatpush1.msra.mxu0 0.0
      %319 = vmatprep.subr.mxu0 0.0
      %320 = vmatpush1.msra.mxu0 0.0
      %321 = vmatprep.subr.mxu0 0.0
      %322 = vmatpush1.msra.mxu0 0.0
      %323 = vmatprep.subr.mxu0 0.0
      %324 = vmatpush1.msra.mxu0 0.0
      %325 = vmatprep.subr.mxu0 0.0
      %326 = vmatpush1.msra.mxu0 0.0
      %327 = vmatprep.subr.mxu0 0.0
      %328 = vmatpush1.msra.mxu0 0.0
      %329 = vmatprep.subr.mxu0 0.0
      %330 = vmatpush1.msra.mxu0 0.0
      %331 = vmatprep.subr.mxu0 0.0
      %332 = vmatpush1.msra.mxu0 0.0
      %333 = vmatprep.subr.mxu0 0.0
      %334 = vmatpush1.msra.mxu0 0.0
      %335 = vmatprep.subr.mxu0 0.0
      %336 = vmatpush1.msra.mxu0 0.0
      %337 = vmatprep.subr.mxu0 0.0
      %338 = vmatpush1.msra.mxu0 0.0
      %339 = vmatprep.subr.mxu0 0.0
      %340 = vmatpush1.msra.mxu0 0.0
      %341 = vmatprep.subr.mxu0 0.0
      %342 = vmatpush1.msra.mxu0 0.0
      %343 = vmatprep.subr.mxu0 0.0
      %344 = vmatpush1.msra.mxu0 0.0
      %345 = vmatprep.subr.mxu0 0.0
      %346 = vmatpush1.msra.mxu0 0.0
      %347 = vmatprep.subr.mxu0 0.0
      %348 = vmatpush1.msra.mxu0 0.0
      %349 = vmatprep.subr.mxu0 0.0
      %350 = vmatpush1.msra.mxu0 0.0
      %351 = vmatprep.subr.mxu0 0.0
      %352 = vmatpush1.msra.mxu0 0.0
      %353 = vmatprep.subr.mxu0 0.0
      %354 = vmatpush1.msra.mxu0 0.0
      %355 = vmatprep.subr.mxu0 0.0
      %356 = vmatpush1.msra.mxu0 0.0
      %357 = vmatprep.subr.mxu0 0.0
      %358 = vmatpush1.msra.mxu0 0.0
      %359 = vmatprep.subr.mxu0 0.0
      %360 = vmatpush1.msra.mxu0 0.0
      %361 = vmatprep.subr.mxu0 0.0
      %362 = vmatpush1.msra.mxu0 0.0
      %363 = vmatprep.subr.mxu0 0.0
      %364 = vmatpush1.msra.mxu0 0.0
      %365 = vmatprep.subr.mxu0 0.0
      %366 = vmatpush1.msra.mxu0 0.0
      %367 = vmatprep.subr.mxu0 0.0
      %368 = vmatpush1.msra.mxu0 0.0
      %369 = vmatprep.subr.mxu0 0.0
      %370 = vmatpush1.msra.mxu0 0.0
      %371 = vmatprep.subr.mxu0 0.0
      %372 = vmatpush1.msra.mxu0 0.0
      %373 = vmatprep.subr.mxu0 0.0
      %374 = vmatpush1.msra.mxu0 0.0
      %375 = vmatprep.mubr.f32.mxu0 0.0
      %376 = vmatmul.mubr.f32.gmra.mrb[0].mxu0 %v302
      %v377 = vpop.f32.mrb[0].mxu0
      %v378 = vadd.f32 0.0, %v377
      %v379 = vpop.f32.mrb[0].mxu0
      %v380 = vadd.f32 0.0, %v379
      %381 = vdwg.mxu0
      %382 = vmatprep.subr.mxu0 0.0
      %383 = vmatpush1.msra.mxu0 %v309
      %384 = vmatprep.subr.mxu0 0.0
      %385 = vmatpush1.msra.mxu0 0.0
      %386 = vmatprep.subr.mxu0 0.0
      %387 = vmatpush1.msra.mxu0 0.0
      %388 = vmatprep.subr.mxu0 0.0
      %389 = vmatpush1.msra.mxu0 0.0
      %390 = vmatprep.subr.mxu0 0.0
      %391 = vmatpush1.msra.mxu0 0.0
      %392 = vmatprep.subr.mxu0 0.0
      %393 = vmatpush1.msra.mxu0 0.0
      %394 = vmatprep.subr.mxu0 0.0
      %395 = vmatpush1.msra.mxu0 0.0
      %396 = vmatprep.subr.mxu0 0.0
      %397 = vmatpush1.msra.mxu0 0.0
      %398 = vmatprep.subr.mxu0 0.0
      %399 = vmatpush1.msra.mxu0 0.0
      %400 = vmatprep.subr.mxu0 0.0
      %401 = vmatpush1.msra.mxu0 0.0
      %402 = vmatprep.subr.mxu0 0.0
      %403 = vmatpush1.msra.mxu0 0.0
      %404 = vmatprep.subr.mxu0 0.0
      %405 = vmatpush1.msra.mxu0 0.0
      %406 = vmatprep.subr.mxu0 0.0
      %407 = vmatpush1.msra.mxu0 0.0
      %408 = vmatprep.subr.mxu0 0.0
      %409 = vmatpush1.msra.mxu0 0.0
      %410 = vmatprep.subr.mxu0 0.0
      %411 = vmatpush1.msra.mxu0 0.0
      %412 = vmatprep.subr.mxu0 0.0
      %413 = vmatpush1.msra.mxu0 0.0
      %414 = vmatprep.subr.mxu0 0.0
      %415 = vmatpush1.msra.mxu0 0.0
      %416 = vmatprep.subr.mxu0 0.0
      %417 = vmatpush1.msra.mxu0 0.0
      %418 = vmatprep.subr.mxu0 0.0
      %419 = vmatpush1.msra.mxu0 0.0
      %420 = vmatprep.subr.mxu0 0.0
      %421 = vmatpush1.msra.mxu0 0.0
      %422 = vmatprep.subr.mxu0 0.0
      %423 = vmatpush1.msra.mxu0 0.0
      %424 = vmatprep.subr.mxu0 0.0
      %425 = vmatpush1.msra.mxu0 0.0
      %426 = vmatprep.subr.mxu0 0.0
      %427 = vmatpush1.msra.mxu0 0.0
      %428 = vmatprep.subr.mxu0 0.0
      %429 = vmatpush1.msra.mxu0 0.0
      %430 = vmatprep.subr.mxu0 0.0
      %431 = vmatpush1.msra.mxu0 0.0
      %432 = vmatprep.subr.mxu0 0.0
      %433 = vmatpush1.msra.mxu0 0.0
      %434 = vmatprep.subr.mxu0 0.0
      %435 = vmatpush1.msra.mxu0 0.0
      %436 = vmatprep.subr.mxu0 0.0
      %437 = vmatpush1.msra.mxu0 0.0
      %438 = vmatprep.subr.mxu0 0.0
      %439 = vmatpush1.msra.mxu0 0.0
      %440 = vmatprep.subr.mxu0 0.0
      %441 = vmatpush1.msra.mxu0 0.0
      %442 = vmatprep.subr.mxu0 0.0
      %443 = vmatpush1.msra.mxu0 0.0
      %444 = vmatprep.subr.mxu0 0.0
      %445 = vmatpush1.msra.mxu0 0.0
      %446 = vmatprep.mubr.f32.mxu0 0.0
      %447 = vmatmul.mubr.f32.gmra.mrb[0].mxu0 %v302
      %v448 = vpop.f32.mrb[0].mxu0
      %v449 = vadd.f32 0.0, %v448
      %v450 = vpop.f32.mrb[0].mxu0
      %451 = vdwg.mxu0
      %v452 = vadd.f32 %v292, %v378
      %v453 = vadd.f32 %v292, %v380
      %v454 = vadd.f32 %v292, %v449
      %s455 = scalar_lea.vmem %s2, 8
      %v456 = vld [vmem:[%s455] sm:$0xff]
      %v457 = vld [vmem:[#allocation2] sm:$0xff]
      %v458 = vld [vmem:[#allocation2 + $0x8] sm:$0xff]
      %v461 = vcombine.high %v457, %v457
      %v462 = vcombine.high %v458, %v458
      %463 = vrot.lane.b32.xlu0 %v457, 127
      %v464 = vpop.permute.xlu0 %463
      %465 = vrot.lane.b32.xlu0 %v461, 127
      %v466 = vpop.permute.xlu0 %465
      %467 = vrot.lane.b32.xlu0 %v458, 127
      %v468 = vpop.permute.xlu0 %467
      %469 = vrot.lane.b32.xlu0 %v462, 127
      %v470 = vpop.permute.xlu0 %469
      %vm471 = vcmask 1039360
      %v472 = vsel %vm471, %v464, %v466
      %v473 = vsel %vm471, %v466, %v468
      %v474 = vsel %vm471, %v468, %v470
      %v476 = vsel %vm300, %v456, 0
      %v478 = vsel %vm304, %v472, 0
      %v480 = vsel %vm304, %v473, 0
      %v482 = vsel %vm304, %v474, 0
      %484 = vmatprep.subr.mxu0 %v480
      %485 = vmatpush1.msra.mxu0 %v478
      %486 = vmatprep.subr.mxu0 0.0
      %487 = vmatpush1.msra.mxu0 0.0
      %488 = vmatprep.subr.mxu0 0.0
      %489 = vmatpush1.msra.mxu0 0.0
      %490 = vmatprep.subr.mxu0 0.0
      %491 = vmatpush1.msra.mxu0 0.0
      %492 = vmatprep.subr.mxu0 0.0
      %493 = vmatpush1.msra.mxu0 0.0
      %494 = vmatprep.subr.mxu0 0.0
      %495 = vmatpush1.msra.mxu0 0.0
      %496 = vmatprep.subr.mxu0 0.0
      %497 = vmatpush1.msra.mxu0 0.0
      %498 = vmatprep.subr.mxu0 0.0
      %499 = vmatpush1.msra.mxu0 0.0
      %500 = vmatprep.subr.mxu0 0.0
      %501 = vmatpush1.msra.mxu0 0.0
      %502 = vmatprep.subr.mxu0 0.0
      %503 = vmatpush1.msra.mxu0 0.0
      %504 = vmatprep.subr.mxu0 0.0
      %505 = vmatpush1.msra.mxu0 0.0
      %506 = vmatprep.subr.mxu0 0.0
      %507 = vmatpush1.msra.mxu0 0.0
      %508 = vmatprep.subr.mxu0 0.0
      %509 = vmatpush1.msra.mxu0 0.0
      %510 = vmatprep.subr.mxu0 0.0
      %511 = vmatpush1.msra.mxu0 0.0
      %512 = vmatprep.subr.mxu0 0.0
      %513 = vmatpush1.msra.mxu0 0.0
      %514 = vmatprep.subr.mxu0 0.0
      %515 = vmatpush1.msra.mxu0 0.0
      %516 = vmatprep.subr.mxu0 0.0
      %517 = vmatpush1.msra.mxu0 0.0
      %518 = vmatprep.subr.mxu0 0.0
      %519 = vmatpush1.msra.mxu0 0.0
      %520 = vmatprep.subr.mxu0 0.0
      %521 = vmatpush1.msra.mxu0 0.0
      %522 = vmatprep.subr.mxu0 0.0
      %523 = vmatpush1.msra.mxu0 0.0
      %524 = vmatprep.subr.mxu0 0.0
      %525 = vmatpush1.msra.mxu0 0.0
      %526 = vmatprep.subr.mxu0 0.0
      %527 = vmatpush1.msra.mxu0 0.0
      %528 = vmatprep.subr.mxu0 0.0
      %529 = vmatpush1.msra.mxu0 0.0
      %530 = vmatprep.subr.mxu0 0.0
      %531 = vmatpush1.msra.mxu0 0.0
      %532 = vmatprep.subr.mxu0 0.0
      %533 = vmatpush1.msra.mxu0 0.0
      %534 = vmatprep.subr.mxu0 0.0
      %535 = vmatpush1.msra.mxu0 0.0
      %536 = vmatprep.subr.mxu0 0.0
      %537 = vmatpush1.msra.mxu0 0.0
      %538 = vmatprep.subr.mxu0 0.0
      %539 = vmatpush1.msra.mxu0 0.0
      %540 = vmatprep.subr.mxu0 0.0
      %541 = vmatpush1.msra.mxu0 0.0
      %542 = vmatprep.subr.mxu0 0.0
      %543 = vmatpush1.msra.mxu0 0.0
      %544 = vmatprep.subr.mxu0 0.0
      %545 = vmatpush1.msra.mxu0 0.0
      %546 = vmatprep.subr.mxu0 0.0
      %547 = vmatpush1.msra.mxu0 0.0
      %548 = vmatprep.mubr.f32.mxu0 0.0
      %549 = vmatmul.mubr.f32.gmra.mrb[0].mxu0 %v476
      %v550 = vpop.f32.mrb[0].mxu0
      %v551 = vadd.f32 0.0, %v550
      %v552 = vpop.f32.mrb[0].mxu0
      %v553 = vadd.f32 0.0, %v552
      %554 = vdwg.mxu0
      %555 = vmatprep.subr.mxu0 0.0
      %556 = vmatpush1.msra.mxu0 %v482
      %557 = vmatprep.subr.mxu0 0.0
      %558 = vmatpush1.msra.mxu0 0.0
      %559 = vmatprep.subr.mxu0 0.0
      %560 = vmatpush1.msra.mxu0 0.0
      %561 = vmatprep.subr.mxu0 0.0
      %562 = vmatpush1.msra.mxu0 0.0
      %563 = vmatprep.subr.mxu0 0.0
      %564 = vmatpush1.msra.mxu0 0.0
      %565 = vmatprep.subr.mxu0 0.0
      %566 = vmatpush1.msra.mxu0 0.0
      %567 = vmatprep.subr.mxu0 0.0
      %568 = vmatpush1.msra.mxu0 0.0
      %569 = vmatprep.subr.mxu0 0.0
      %570 = vmatpush1.msra.mxu0 0.0
      %571 = vmatprep.subr.mxu0 0.0
      %572 = vmatpush1.msra.mxu0 0.0
      %573 = vmatprep.subr.mxu0 0.0
      %574 = vmatpush1.msra.mxu0 0.0
      %575 = vmatprep.subr.mxu0 0.0
      %576 = vmatpush1.msra.mxu0 0.0
      %577 = vmatprep.subr.mxu0 0.0
      %578 = vmatpush1.msra.mxu0 0.0
      %579 = vmatprep.subr.mxu0 0.0
      %580 = vmatpush1.msra.mxu0 0.0
      %581 = vmatprep.subr.mxu0 0.0
      %582 = vmatpush1.msra.mxu0 0.0
      %583 = vmatprep.subr.mxu0 0.0
      %584 = vmatpush1.msra.mxu0 0.0
      %585 = vmatprep.subr.mxu0 0.0
      %586 = vmatpush1.msra.mxu0 0.0
      %587 = vmatprep.subr.mxu0 0.0
      %588 = vmatpush1.msra.mxu0 0.0
      %589 = vmatprep.subr.mxu0 0.0
      %590 = vmatpush1.msra.mxu0 0.0
      %591 = vmatprep.subr.mxu0 0.0
      %592 = vmatpush1.msra.mxu0 0.0
      %593 = vmatprep.subr.mxu0 0.0
      %594 = vmatpush1.msra.mxu0 0.0
      %595 = vmatprep.subr.mxu0 0.0
      %596 = vmatpush1.msra.mxu0 0.0
      %597 = vmatprep.subr.mxu0 0.0
      %598 = vmatpush1.msra.mxu0 0.0
      %599 = vmatprep.subr.mxu0 0.0
      %600 = vmatpush1.msra.mxu0 0.0
      %601 = vmatprep.subr.mxu0 0.0
      %602 = vmatpush1.msra.mxu0 0.0
      %603 = vmatprep.subr.mxu0 0.0
      %604 = vmatpush1.msra.mxu0 0.0
      %605 = vmatprep.subr.mxu0 0.0
      %606 = vmatpush1.msra.mxu0 0.0
      %607 = vmatprep.subr.mxu0 0.0
      %608 = vmatpush1.msra.mxu0 0.0
      %609 = vmatprep.subr.mxu0 0.0
      %610 = vmatpush1.msra.mxu0 0.0
      %611 = vmatprep.subr.mxu0 0.0
      %612 = vmatpush1.msra.mxu0 0.0
      %613 = vmatprep.subr.mxu0 0.0
      %614 = vmatpush1.msra.mxu0 0.0
      %615 = vmatprep.subr.mxu0 0.0
      %616 = vmatpush1.msra.mxu0 0.0
      %617 = vmatprep.subr.mxu0 0.0
      %618 = vmatpush1.msra.mxu0 0.0
      %619 = vmatprep.mubr.f32.mxu0 0.0
      %620 = vmatmul.mubr.f32.gmra.mrb[0].mxu0 %v476
      %v621 = vpop.f32.mrb[0].mxu0
      %v622 = vadd.f32 0.0, %v621
      %v623 = vpop.f32.mrb[0].mxu0
      %624 = vdwg.mxu0
      %v625 = vadd.f32 %v452, %v551
      %v626 = vadd.f32 %v453, %v553
      %v627 = vadd.f32 %v454, %v622
      %s628 = scalar_lea.vmem %s2, 16
      %v629 = vld [vmem:[%s628] sm:$0xff]
      %v630 = vld [vmem:[#allocation2] sm:$0xff]
      %v631 = vld [vmem:[#allocation2 + $0x8] sm:$0xff]
      %v634 = vcombine.high %v630, %v630
      %v635 = vcombine.high %v631, %v631
      %636 = vrot.lane.b32.xlu0 %v630, 126
      %v637 = vpop.permute.xlu0 %636
      %638 = vrot.lane.b32.xlu0 %v634, 126
      %v639 = vpop.permute.xlu0 %638
      %640 = vrot.lane.b32.xlu0 %v631, 126
      %v641 = vpop.permute.xlu0 %640
      %642 = vrot.lane.b32.xlu0 %v635, 126
      %v643 = vpop.permute.xlu0 %642
      %vm644 = vcmask 1031168
      %v645 = vsel %vm644, %v637, %v639
      %v646 = vsel %vm644, %v639, %v641
      %v647 = vsel %vm644, %v641, %v643
      %v649 = vsel %vm300, %v629, 0
      %v651 = vsel %vm304, %v645, 0
      %v653 = vsel %vm304, %v646, 0
      %v655 = vsel %vm304, %v647, 0
      %657 = vmatprep.subr.mxu0 %v653
      %658 = vmatpush1.msra.mxu0 %v651
      %659 = vmatprep.subr.mxu0 0.0
      %660 = vmatpush1.msra.mxu0 0.0
      %661 = vmatprep.subr.mxu0 0.0
      %662 = vmatpush1.msra.mxu0 0.0
      %663 = vmatprep.subr.mxu0 0.0
      %664 = vmatpush1.msra.mxu0 0.0
      %665 = vmatprep.subr.mxu0 0.0
      %666 = vmatpush1.msra.mxu0 0.0
      %667 = vmatprep.subr.mxu0 0.0
      %668 = vmatpush1.msra.mxu0 0.0
      %669 = vmatprep.subr.mxu0 0.0
      %670 = vmatpush1.msra.mxu0 0.0
      %671 = vmatprep.subr.mxu0 0.0
      %672 = vmatpush1.msra.mxu0 0.0
      %673 = vmatprep.subr.mxu0 0.0
      %674 = vmatpush1.msra.mxu0 0.0
      %675 = vmatprep.subr.mxu0 0.0
      %676 = vmatpush1.msra.mxu0 0.0
      %677 = vmatprep.subr.mxu0 0.0
      %678 = vmatpush1.msra.mxu0 0.0
      %679 = vmatprep.subr.mxu0 0.0
      %680 = vmatpush1.msra.mxu0 0.0
      %681 = vmatprep.subr.mxu0 0.0
      %682 = vmatpush1.msra.mxu0 0.0
      %683 = vmatprep.subr.mxu0 0.0
      %684 = vmatpush1.msra.mxu0 0.0
      %685 = vmatprep.subr.mxu0 0.0
      %686 = vmatpush1.msra.mxu0 0.0
      %687 = vmatprep.subr.mxu0 0.0
      %688 = vmatpush1.msra.mxu0 0.0
      %689 = vmatprep.subr.mxu0 0.0
      %690 = vmatpush1.msra.mxu0 0.0
      %691 = vmatprep.subr.mxu0 0.0
      %692 = vmatpush1.msra.mxu0 0.0
      %693 = vmatprep.subr.mxu0 0.0
      %694 = vmatpush1.msra.mxu0 0.0
      %695 = vmatprep.subr.mxu0 0.0
      %696 = vmatpush1.msra.mxu0 0.0
      %697 = vmatprep.subr.mxu0 0.0
      %698 = vmatpush1.msra.mxu0 0.0
      %699 = vmatprep.subr.mxu0 0.0
      %700 = vmatpush1.msra.mxu0 0.0
      %701 = vmatprep.subr.mxu0 0.0
      %702 = vmatpush1.msra.mxu0 0.0
      %703 = vmatprep.subr.mxu0 0.0
      %704 = vmatpush1.msra.mxu0 0.0
      %705 = vmatprep.subr.mxu0 0.0
      %706 = vmatpush1.msra.mxu0 0.0
      %707 = vmatprep.subr.mxu0 0.0
      %708 = vmatpush1.msra.mxu0 0.0
      %709 = vmatprep.subr.mxu0 0.0
      %710 = vmatpush1.msra.mxu0 0.0
      %711 = vmatprep.subr.mxu0 0.0
      %712 = vmatpush1.msra.mxu0 0.0
      %713 = vmatprep.subr.mxu0 0.0
      %714 = vmatpush1.msra.mxu0 0.0
      %715 = vmatprep.subr.mxu0 0.0
      %716 = vmatpush1.msra.mxu0 0.0
      %717 = vmatprep.subr.mxu0 0.0
      %718 = vmatpush1.msra.mxu0 0.0
      %719 = vmatprep.subr.mxu0 0.0
      %720 = vmatpush1.msra.mxu0 0.0
      %721 = vmatprep.mubr.f32.mxu0 0.0
      %722 = vmatmul.mubr.f32.gmra.mrb[0].mxu0 %v649
      %v723 = vpop.f32.mrb[0].mxu0
      %v724 = vadd.f32 0.0, %v723
      %v725 = vpop.f32.mrb[0].mxu0
      %v726 = vadd.f32 0.0, %v725
      %727 = vdwg.mxu0
      %728 = vmatprep.subr.mxu0 0.0
      %729 = vmatpush1.msra.mxu0 %v655
      %730 = vmatprep.subr.mxu0 0.0
      %731 = vmatpush1.msra.mxu0 0.0
      %732 = vmatprep.subr.mxu0 0.0
      %733 = vmatpush1.msra.mxu0 0.0
      %734 = vmatprep.subr.mxu0 0.0
      %735 = vmatpush1.msra.mxu0 0.0
      %736 = vmatprep.subr.mxu0 0.0
      %737 = vmatpush1.msra.mxu0 0.0
      %738 = vmatprep.subr.mxu0 0.0
      %739 = vmatpush1.msra.mxu0 0.0
      %740 = vmatprep.subr.mxu0 0.0
      %741 = vmatpush1.msra.mxu0 0.0
      %742 = vmatprep.subr.mxu0 0.0
      %743 = vmatpush1.msra.mxu0 0.0
      %744 = vmatprep.subr.mxu0 0.0
      %745 = vmatpush1.msra.mxu0 0.0
      %746 = vmatprep.subr.mxu0 0.0
      %747 = vmatpush1.msra.mxu0 0.0
      %748 = vmatprep.subr.mxu0 0.0
      %749 = vmatpush1.msra.mxu0 0.0
      %750 = vmatprep.subr.mxu0 0.0
      %751 = vmatpush1.msra.mxu0 0.0
      %752 = vmatprep.subr.mxu0 0.0
      %753 = vmatpush1.msra.mxu0 0.0
      %754 = vmatprep.subr.mxu0 0.0
      %755 = vmatpush1.msra.mxu0 0.0
      %756 = vmatprep.subr.mxu0 0.0
      %757 = vmatpush1.msra.mxu0 0.0
      %758 = vmatprep.subr.mxu0 0.0
      %759 = vmatpush1.msra.mxu0 0.0
      %760 = vmatprep.subr.mxu0 0.0
      %761 = vmatpush1.msra.mxu0 0.0
      %762 = vmatprep.subr.mxu0 0.0
      %763 = vmatpush1.msra.mxu0 0.0
      %764 = vmatprep.subr.mxu0 0.0
      %765 = vmatpush1.msra.mxu0 0.0
      %766 = vmatprep.subr.mxu0 0.0
      %767 = vmatpush1.msra.mxu0 0.0
      %768 = vmatprep.subr.mxu0 0.0
      %769 = vmatpush1.msra.mxu0 0.0
      %770 = vmatprep.subr.mxu0 0.0
      %771 = vmatpush1.msra.mxu0 0.0
      %772 = vmatprep.subr.mxu0 0.0
      %773 = vmatpush1.msra.mxu0 0.0
      %774 = vmatprep.subr.mxu0 0.0
      %775 = vmatpush1.msra.mxu0 0.0
      %776 = vmatprep.subr.mxu0 0.0
      %777 = vmatpush1.msra.mxu0 0.0
      %778 = vmatprep.subr.mxu0 0.0
      %779 = vmatpush1.msra.mxu0 0.0
      %780 = vmatprep.subr.mxu0 0.0
      %781 = vmatpush1.msra.mxu0 0.0
      %782 = vmatprep.subr.mxu0 0.0
      %783 = vmatpush1.msra.mxu0 0.0
      %784 = vmatprep.subr.mxu0 0.0
      %785 = vmatpush1.msra.mxu0 0.0
      %786 = vmatprep.subr.mxu0 0.0
      %787 = vmatpush1.msra.mxu0 0.0
      %788 = vmatprep.subr.mxu0 0.0
      %789 = vmatpush1.msra.mxu0 0.0
      %790 = vmatprep.subr.mxu0 0.0
      %791 = vmatpush1.msra.mxu0 0.0
      %792 = vmatprep.mubr.f32.mxu0 0.0
      %793 = vmatmul.mubr.f32.gmra.mrb[0].mxu0 %v649
      %v794 = vpop.f32.mrb[0].mxu0
      %v795 = vadd.f32 0.0, %v794
      %v796 = vpop.f32.mrb[0].mxu0
      %797 = vdwg.mxu0
      %v798 = vadd.f32 %v625, %v724
      %v799 = vadd.f32 %v626, %v726
      %v800 = vadd.f32 %v627, %v795
      %s801 = scalar_lea.vmem %s2, 24
      %v802 = vld [vmem:[%s801] sm:$0xff]
      %v803 = vld [vmem:[#allocation2] sm:$0xff]
      %v804 = vld [vmem:[#allocation2 + $0x8] sm:$0xff]
      %v807 = vcombine.high %v803, %v803
      %v808 = vcombine.high %v804, %v804
      %809 = vrot.lane.b32.xlu0 %v803, 110
      %v810 = vpop.permute.xlu0 %809
      %811 = vrot.lane.b32.xlu0 %v807, 110
      %v812 = vpop.permute.xlu0 %811
      %813 = vrot.lane.b32.xlu0 %v804, 110
      %v814 = vpop.permute.xlu0 %813
      %815 = vrot.lane.b32.xlu0 %v808, 110
      %v816 = vpop.permute.xlu0 %815
      %vm817 = vcmask 900096
      %v818 = vsel %vm817, %v810, %v812
      %v819 = vsel %vm817, %v812, %v814
      %v820 = vsel %vm817, %v814, %v816
      %v822 = vsel %vm300, %v802, 0
      %v824 = vsel %vm304, %v818, 0
      %v826 = vsel %vm304, %v819, 0
      %v828 = vsel %vm304, %v820, 0
      %830 = vmatprep.subr.mxu0 %v826
      %831 = vmatpush1.msra.mxu0 %v824
      %832 = vmatprep.subr.mxu0 0.0
      %833 = vmatpush1.msra.mxu0 0.0
      %834 = vmatprep.subr.mxu0 0.0
      %835 = vmatpush1.msra.mxu0 0.0
      %836 = vmatprep.subr.mxu0 0.0
      %837 = vmatpush1.msra.mxu0 0.0
      %838 = vmatprep.subr.mxu0 0.0
      %839 = vmatpush1.msra.mxu0 0.0
      %840 = vmatprep.subr.mxu0 0.0
      %841 = vmatpush1.msra.mxu0 0.0
      %842 = vmatprep.subr.mxu0 0.0
      %843 = vmatpush1.msra.mxu0 0.0
      %844 = vmatprep.subr.mxu0 0.0
      %845 = vmatpush1.msra.mxu0 0.0
      %846 = vmatprep.subr.mxu0 0.0
      %847 = vmatpush1.msra.mxu0 0.0
      %848 = vmatprep.subr.mxu0 0.0
      %849 = vmatpush1.msra.mxu0 0.0
      %850 = vmatprep.subr.mxu0 0.0
      %851 = vmatpush1.msra.mxu0 0.0
      %852 = vmatprep.subr.mxu0 0.0
      %853 = vmatpush1.msra.mxu0 0.0
      %854 = vmatprep.subr.mxu0 0.0
      %855 = vmatpush1.msra.mxu0 0.0
      %856 = vmatprep.subr.mxu0 0.0
      %857 = vmatpush1.msra.mxu0 0.0
      %858 = vmatprep.subr.mxu0 0.0
      %859 = vmatpush1.msra.mxu0 0.0
      %860 = vmatprep.subr.mxu0 0.0
      %861 = vmatpush1.msra.mxu0 0.0
      %862 = vmatprep.subr.mxu0 0.0
      %863 = vmatpush1.msra.mxu0 0.0
      %864 = vmatprep.subr.mxu0 0.0
      %865 = vmatpush1.msra.mxu0 0.0
      %866 = vmatprep.subr.mxu0 0.0
      %867 = vmatpush1.msra.mxu0 0.0
      %868 = vmatprep.subr.mxu0 0.0
      %869 = vmatpush1.msra.mxu0 0.0
      %870 = vmatprep.subr.mxu0 0.0
      %871 = vmatpush1.msra.mxu0 0.0
      %872 = vmatprep.subr.mxu0 0.0
      %873 = vmatpush1.msra.mxu0 0.0
      %874 = vmatprep.subr.mxu0 0.0
      %875 = vmatpush1.msra.mxu0 0.0
      %876 = vmatprep.subr.mxu0 0.0
      %877 = vmatpush1.msra.mxu0 0.0
      %878 = vmatprep.subr.mxu0 0.0
      %879 = vmatpush1.msra.mxu0 0.0
      %880 = vmatprep.subr.mxu0 0.0
      %881 = vmatpush1.msra.mxu0 0.0
      %882 = vmatprep.subr.mxu0 0.0
      %883 = vmatpush1.msra.mxu0 0.0
      %884 = vmatprep.subr.mxu0 0.0
      %885 = vmatpush1.msra.mxu0 0.0
      %886 = vmatprep.subr.mxu0 0.0
      %887 = vmatpush1.msra.mxu0 0.0
      %888 = vmatprep.subr.mxu0 0.0
      %889 = vmatpush1.msra.mxu0 0.0
      %890 = vmatprep.subr.mxu0 0.0
      %891 = vmatpush1.msra.mxu0 0.0
      %892 = vmatprep.subr.mxu0 0.0
      %893 = vmatpush1.msra.mxu0 0.0
      %894 = vmatprep.mubr.f32.mxu0 0.0
      %895 = vmatmul.mubr.f32.gmra.mrb[0].mxu0 %v822
      %v896 = vpop.f32.mrb[0].mxu0
      %v897 = vadd.f32 0.0, %v896
      %v898 = vpop.f32.mrb[0].mxu0
      %v899 = vadd.f32 0.0, %v898
      %900 = vdwg.mxu0
      %901 = vmatprep.subr.mxu0 0.0
      %902 = vmatpush1.msra.mxu0 %v828
      %903 = vmatprep.subr.mxu0 0.0
      %904 = vmatpush1.msra.mxu0 0.0
      %905 = vmatprep.subr.mxu0 0.0
      %906 = vmatpush1.msra.mxu0 0.0
      %907 = vmatprep.subr.mxu0 0.0
      %908 = vmatpush1.msra.mxu0 0.0
      %909 = vmatprep.subr.mxu0 0.0
      %910 = vmatpush1.msra.mxu0 0.0
      %911 = vmatprep.subr.mxu0 0.0
      %912 = vmatpush1.msra.mxu0 0.0
      %913 = vmatprep.subr.mxu0 0.0
      %914 = vmatpush1.msra.mxu0 0.0
      %915 = vmatprep.subr.mxu0 0.0
      %916 = vmatpush1.msra.mxu0 0.0
      %917 = vmatprep.subr.mxu0 0.0
      %918 = vmatpush1.msra.mxu0 0.0
      %919 = vmatprep.subr.mxu0 0.0
      %920 = vmatpush1.msra.mxu0 0.0
      %921 = vmatprep.subr.mxu0 0.0
      %922 = vmatpush1.msra.mxu0 0.0
      %923 = vmatprep.subr.mxu0 0.0
      %924 = vmatpush1.msra.mxu0 0.0
      %925 = vmatprep.subr.mxu0 0.0
      %926 = vmatpush1.msra.mxu0 0.0
      %927 = vmatprep.subr.mxu0 0.0
      %928 = vmatpush1.msra.mxu0 0.0
      %929 = vmatprep.subr.mxu0 0.0
      %930 = vmatpush1.msra.mxu0 0.0
      %931 = vmatprep.subr.mxu0 0.0
      %932 = vmatpush1.msra.mxu0 0.0
      %933 = vmatprep.subr.mxu0 0.0
      %934 = vmatpush1.msra.mxu0 0.0
      %935 = vmatprep.subr.mxu0 0.0
      %936 = vmatpush1.msra.mxu0 0.0
      %937 = vmatprep.subr.mxu0 0.0
      %938 = vmatpush1.msra.mxu0 0.0
      %939 = vmatprep.subr.mxu0 0.0
      %940 = vmatpush1.msra.mxu0 0.0
      %941 = vmatprep.subr.mxu0 0.0
      %942 = vmatpush1.msra.mxu0 0.0
      %943 = vmatprep.subr.mxu0 0.0
      %944 = vmatpush1.msra.mxu0 0.0
      %945 = vmatprep.subr.mxu0 0.0
      %946 = vmatpush1.msra.mxu0 0.0
      %947 = vmatprep.subr.mxu0 0.0
      %948 = vmatpush1.msra.mxu0 0.0
      %949 = vmatprep.subr.mxu0 0.0
      %950 = vmatpush1.msra.mxu0 0.0
      %951 = vmatprep.subr.mxu0 0.0
      %952 = vmatpush1.msra.mxu0 0.0
      %953 = vmatprep.subr.mxu0 0.0
      %954 = vmatpush1.msra.mxu0 0.0
      %955 = vmatprep.subr.mxu0 0.0
      %956 = vmatpush1.msra.mxu0 0.0
      %957 = vmatprep.subr.mxu0 0.0
      %958 = vmatpush1.msra.mxu0 0.0
      %959 = vmatprep.subr.mxu0 0.0
      %960 = vmatpush1.msra.mxu0 0.0
      %961 = vmatprep.subr.mxu0 0.0
      %962 = vmatpush1.msra.mxu0 0.0
      %963 = vmatprep.subr.mxu0 0.0
      %964 = vmatpush1.msra.mxu0 0.0
      %965 = vmatprep.mubr.f32.mxu0 0.0
      %966 = vmatmul.mubr.f32.gmra.mrb[0].mxu0 %v822
      %v967 = vpop.f32.mrb[0].mxu0
      %v968 = vadd.f32 0.0, %v967
      %v969 = vpop.f32.mrb[0].mxu0
      %970 = vdwg.mxu0
      %v971 = vadd.f32 %v798, %v897
      %v972 = vadd.f32 %v799, %v899
      %v973 = vadd.f32 %v800, %v968
      %s974 = scalar_lea.vmem %s2, 32
      %v975 = vld [vmem:[%s974] sm:$0xff]
      %v976 = vld [vmem:[#allocation2] sm:$0xff]
      %v977 = vld [vmem:[#allocation2 + $0x8] sm:$0xff]
      %v980 = vcombine.high %v976, %v976
      %v981 = vcombine.high %v977, %v977
      %982 = vrot.lane.b32.xlu0 %v976, 109
      %v983 = vpop.permute.xlu0 %982
      %984 = vrot.lane.b32.xlu0 %v980, 109
      %v985 = vpop.permute.xlu0 %984
      %986 = vrot.lane.b32.xlu0 %v977, 109
      %v987 = vpop.permute.xlu0 %986
      %988 = vrot.lane.b32.xlu0 %v981, 109
      %v989 = vpop.permute.xlu0 %988
      %vm990 = vcmask 891904
      %v991 = vsel %vm990, %v983, %v985
      %v992 = vsel %vm990, %v985, %v987
      %v993 = vsel %vm990, %v987, %v989
      %v995 = vsel %vm300, %v975, 0
      %v997 = vsel %vm304, %v991, 0
      %v999 = vsel %vm304, %v992, 0
      %v1001 = vsel %vm304, %v993, 0
      %1003 = vmatprep.subr.mxu0 %v999
      %1004 = vmatpush1.msra.mxu0 %v997
      %1005 = vmatprep.subr.mxu0 0.0
      %1006 = vmatpush1.msra.mxu0 0.0
      %1007 = vmatprep.subr.mxu0 0.0
      %1008 = vmatpush1.msra.mxu0 0.0
      %1009 = vmatprep.subr.mxu0 0.0
      %1010 = vmatpush1.msra.mxu0 0.0
      %1011 = vmatprep.subr.mxu0 0.0
      %1012 = vmatpush1.msra.mxu0 0.0
      %1013 = vmatprep.subr.mxu0 0.0
      %1014 = vmatpush1.msra.mxu0 0.0
      %1015 = vmatprep.subr.mxu0 0.0
      %1016 = vmatpush1.msra.mxu0 0.0
      %1017 = vmatprep.subr.mxu0 0.0
      %1018 = vmatpush1.msra.mxu0 0.0
      %1019 = vmatprep.subr.mxu0 0.0
      %1020 = vmatpush1.msra.mxu0 0.0
      %1021 = vmatprep.subr.mxu0 0.0
      %1022 = vmatpush1.msra.mxu0 0.0
      %1023 = vmatprep.subr.mxu0 0.0
      %1024 = vmatpush1.msra.mxu0 0.0
      %1025 = vmatprep.subr.mxu0 0.0
      %1026 = vmatpush1.msra.mxu0 0.0
      %1027 = vmatprep.subr.mxu0 0.0
      %1028 = vmatpush1.msra.mxu0 0.0
      %1029 = vmatprep.subr.mxu0 0.0
      %1030 = vmatpush1.msra.mxu0 0.0
      %1031 = vmatprep.subr.mxu0 0.0
      %1032 = vmatpush1.msra.mxu0 0.0
      %1033 = vmatprep.subr.mxu0 0.0
      %1034 = vmatpush1.msra.mxu0 0.0
      %1035 = vmatprep.subr.mxu0 0.0
      %1036 = vmatpush1.msra.mxu0 0.0
      %1037 = vmatprep.subr.mxu0 0.0
      %1038 = vmatpush1.msra.mxu0 0.0
      %1039 = vmatprep.subr.mxu0 0.0
      %1040 = vmatpush1.msra.mxu0 0.0
      %1041 = vmatprep.subr.mxu0 0.0
      %1042 = vmatpush1.msra.mxu0 0.0
      %1043 = vmatprep.subr.mxu0 0.0
      %1044 = vmatpush1.msra.mxu0 0.0
      %1045 = vmatprep.subr.mxu0 0.0
      %1046 = vmatpush1.msra.mxu0 0.0
      %1047 = vmatprep.subr.mxu0 0.0
      %1048 = vmatpush1.msra.mxu0 0.0
      %1049 = vmatprep.subr.mxu0 0.0
      %1050 = vmatpush1.msra.mxu0 0.0
      %1051 = vmatprep.subr.mxu0 0.0
      %1052 = vmatpush1.msra.mxu0 0.0
      %1053 = vmatprep.subr.mxu0 0.0
      %1054 = vmatpush1.msra.mxu0 0.0
      %1055 = vmatprep.subr.mxu0 0.0
      %1056 = vmatpush1.msra.mxu0 0.0
      %1057 = vmatprep.subr.mxu0 0.0
      %1058 = vmatpush1.msra.mxu0 0.0
      %1059 = vmatprep.subr.mxu0 0.0
      %1060 = vmatpush1.msra.mxu0 0.0
      %1061 = vmatprep.subr.mxu0 0.0
      %1062 = vmatpush1.msra.mxu0 0.0
      %1063 = vmatprep.subr.mxu0 0.0
      %1064 = vmatpush1.msra.mxu0 0.0
      %1065 = vmatprep.subr.mxu0 0.0
      %1066 = vmatpush1.msra.mxu0 0.0
      %1067 = vmatprep.mubr.f32.mxu0 0.0
      %1068 = vmatmul.mubr.f32.gmra.mrb[0].mxu0 %v995
      %v1069 = vpop.f32.mrb[0].mxu0
      %v1070 = vadd.f32 0.0, %v1069
      %v1071 = vpop.f32.mrb[0].mxu0
      %v1072 = vadd.f32 0.0, %v1071
      %1073 = vdwg.mxu0
      %1074 = vmatprep.subr.mxu0 0.0
      %1075 = vmatpush1.msra.mxu0 %v1001
      %1076 = vmatprep.subr.mxu0 0.0
      %1077 = vmatpush1.msra.mxu0 0.0
      %1078 = vmatprep.subr.mxu0 0.0
      %1079 = vmatpush1.msra.mxu0 0.0
      %1080 = vmatprep.subr.mxu0 0.0
      %1081 = vmatpush1.msra.mxu0 0.0
      %1082 = vmatprep.subr.mxu0 0.0
      %1083 = vmatpush1.msra.mxu0 0.0
      %1084 = vmatprep.subr.mxu0 0.0
      %1085 = vmatpush1.msra.mxu0 0.0
      %1086 = vmatprep.subr.mxu0 0.0
      %1087 = vmatpush1.msra.mxu0 0.0
      %1088 = vmatprep.subr.mxu0 0.0
      %1089 = vmatpush1.msra.mxu0 0.0
      %1090 = vmatprep.subr.mxu0 0.0
      %1091 = vmatpush1.msra.mxu0 0.0
      %1092 = vmatprep.subr.mxu0 0.0
      %1093 = vmatpush1.msra.mxu0 0.0
      %1094 = vmatprep.subr.mxu0 0.0
      %1095 = vmatpush1.msra.mxu0 0.0
      %1096 = vmatprep.subr.mxu0 0.0
      %1097 = vmatpush1.msra.mxu0 0.0
      %1098 = vmatprep.subr.mxu0 0.0
      %1099 = vmatpush1.msra.mxu0 0.0
      %1100 = vmatprep.subr.mxu0 0.0
      %1101 = vmatpush1.msra.mxu0 0.0
      %1102 = vmatprep.subr.mxu0 0.0
      %1103 = vmatpush1.msra.mxu0 0.0
      %1104 = vmatprep.subr.mxu0 0.0
      %1105 = vmatpush1.msra.mxu0 0.0
      %1106 = vmatprep.subr.mxu0 0.0
      %1107 = vmatpush1.msra.mxu0 0.0
      %1108 = vmatprep.subr.mxu0 0.0
      %1109 = vmatpush1.msra.mxu0 0.0
      %1110 = vmatprep.subr.mxu0 0.0
      %1111 = vmatpush1.msra.mxu0 0.0
      %1112 = vmatprep.subr.mxu0 0.0
      %1113 = vmatpush1.msra.mxu0 0.0
      %1114 = vmatprep.subr.mxu0 0.0
      %1115 = vmatpush1.msra.mxu0 0.0
      %1116 = vmatprep.subr.mxu0 0.0
      %1117 = vmatpush1.msra.mxu0 0.0
      %1118 = vmatprep.subr.mxu0 0.0
      %1119 = vmatpush1.msra.mxu0 0.0
      %1120 = vmatprep.subr.mxu0 0.0
      %1121 = vmatpush1.msra.mxu0 0.0
      %1122 = vmatprep.subr.mxu0 0.0
      %1123 = vmatpush1.msra.mxu0 0.0
      %1124 = vmatprep.subr.mxu0 0.0
      %1125 = vmatpush1.msra.mxu0 0.0
      %1126 = vmatprep.subr.mxu0 0.0
      %1127 = vmatpush1.msra.mxu0 0.0
      %1128 = vmatprep.subr.mxu0 0.0
      %1129 = vmatpush1.msra.mxu0 0.0
      %1130 = vmatprep.subr.mxu0 0.0
      %1131 = vmatpush1.msra.mxu0 0.0
      %1132 = vmatprep.subr.mxu0 0.0
      %1133 = vmatpush1.msra.mxu0 0.0
      %1134 = vmatprep.subr.mxu0 0.0
      %1135 = vmatpush1.msra.mxu0 0.0
      %1136 = vmatprep.subr.mxu0 0.0
      %1137 = vmatpush1.msra.mxu0 0.0
      %1138 = vmatprep.mubr.f32.mxu0 0.0
      %1139 = vmatmul.mubr.f32.gmra.mrb[0].mxu0 %v995
      %v1140 = vpop.f32.mrb[0].mxu0
      %v1141 = vadd.f32 0.0, %v1140
      %v1142 = vpop.f32.mrb[0].mxu0
      %1143 = vdwg.mxu0
      %v1144 = vadd.f32 %v971, %v1070
      %v1145 = vadd.f32 %v972, %v1072
      %v1146 = vadd.f32 %v973, %v1141
      %s1147 = scalar_lea.vmem %s2, 40
      %v1148 = vld [vmem:[%s1147] sm:$0xff]
      %v1149 = vld [vmem:[#allocation2] sm:$0xff]
      %v1150 = vld [vmem:[#allocation2 + $0x8] sm:$0xff]
      %v1153 = vcombine.high %v1149, %v1149
      %v1154 = vcombine.high %v1150, %v1150
      %1155 = vrot.lane.b32.xlu0 %v1149, 108
      %v1156 = vpop.permute.xlu0 %1155
      %1157 = vrot.lane.b32.xlu0 %v1153, 108
      %v1158 = vpop.permute.xlu0 %1157
      %1159 = vrot.lane.b32.xlu0 %v1150, 108
      %v1160 = vpop.permute.xlu0 %1159
      %1161 = vrot.lane.b32.xlu0 %v1154, 108
      %v1162 = vpop.permute.xlu0 %1161
      %vm1163 = vcmask 883712
      %v1164 = vsel %vm1163, %v1156, %v1158
      %v1165 = vsel %vm1163, %v1158, %v1160
      %v1166 = vsel %vm1163, %v1160, %v1162
      %v1168 = vsel %vm300, %v1148, 0
      %v1170 = vsel %vm304, %v1164, 0
      %v1172 = vsel %vm304, %v1165, 0
      %v1174 = vsel %vm304, %v1166, 0
      %1176 = vmatprep.subr.mxu0 %v1172
      %1177 = vmatpush1.msra.mxu0 %v1170
      %1178 = vmatprep.subr.mxu0 0.0
      %1179 = vmatpush1.msra.mxu0 0.0
      %1180 = vmatprep.subr.mxu0 0.0
      %1181 = vmatpush1.msra.mxu0 0.0
      %1182 = vmatprep.subr.mxu0 0.0
      %1183 = vmatpush1.msra.mxu0 0.0
      %1184 = vmatprep.subr.mxu0 0.0
      %1185 = vmatpush1.msra.mxu0 0.0
      %1186 = vmatprep.subr.mxu0 0.0
      %1187 = vmatpush1.msra.mxu0 0.0
      %1188 = vmatprep.subr.mxu0 0.0
      %1189 = vmatpush1.msra.mxu0 0.0
      %1190 = vmatprep.subr.mxu0 0.0
      %1191 = vmatpush1.msra.mxu0 0.0
      %1192 = vmatprep.subr.mxu0 0.0
      %1193 = vmatpush1.msra.mxu0 0.0
      %1194 = vmatprep.subr.mxu0 0.0
      %1195 = vmatpush1.msra.mxu0 0.0
      %1196 = vmatprep.subr.mxu0 0.0
      %1197 = vmatpush1.msra.mxu0 0.0
      %1198 = vmatprep.subr.mxu0 0.0
      %1199 = vmatpush1.msra.mxu0 0.0
      %1200 = vmatprep.subr.mxu0 0.0
      %1201 = vmatpush1.msra.mxu0 0.0
      %1202 = vmatprep.subr.mxu0 0.0
      %1203 = vmatpush1.msra.mxu0 0.0
      %1204 = vmatprep.subr.mxu0 0.0
      %1205 = vmatpush1.msra.mxu0 0.0
      %1206 = vmatprep.subr.mxu0 0.0
      %1207 = vmatpush1.msra.mxu0 0.0
      %1208 = vmatprep.subr.mxu0 0.0
      %1209 = vmatpush1.msra.mxu0 0.0
      %1210 = vmatprep.subr.mxu0 0.0
      %1211 = vmatpush1.msra.mxu0 0.0
      %1212 = vmatprep.subr.mxu0 0.0
      %1213 = vmatpush1.msra.mxu0 0.0
      %1214 = vmatprep.subr.mxu0 0.0
      %1215 = vmatpush1.msra.mxu0 0.0
      %1216 = vmatprep.subr.mxu0 0.0
      %1217 = vmatpush1.msra.mxu0 0.0
      %1218 = vmatprep.subr.mxu0 0.0
      %1219 = vmatpush1.msra.mxu0 0.0
      %1220 = vmatprep.subr.mxu0 0.0
      %1221 = vmatpush1.msra.mxu0 0.0
      %1222 = vmatprep.subr.mxu0 0.0
      %1223 = vmatpush1.msra.mxu0 0.0
      %1224 = vmatprep.subr.mxu0 0.0
      %1225 = vmatpush1.msra.mxu0 0.0
      %1226 = vmatprep.subr.mxu0 0.0
      %1227 = vmatpush1.msra.mxu0 0.0
      %1228 = vmatprep.subr.mxu0 0.0
      %1229 = vmatpush1.msra.mxu0 0.0
      %1230 = vmatprep.subr.mxu0 0.0
      %1231 = vmatpush1.msra.mxu0 0.0
      %1232 = vmatprep.subr.mxu0 0.0
      %1233 = vmatpush1.msra.mxu0 0.0
      %1234 = vmatprep.subr.mxu0 0.0
      %1235 = vmatpush1.msra.mxu0 0.0
      %1236 = vmatprep.subr.mxu0 0.0
      %1237 = vmatpush1.msra.mxu0 0.0
      %1238 = vmatprep.subr.mxu0 0.0
      %1239 = vmatpush1.msra.mxu0 0.0
      %1240 = vmatprep.mubr.f32.mxu0 0.0
      %1241 = vmatmul.mubr.f32.gmra.mrb[0].mxu0 %v1168
      %v1242 = vpop.f32.mrb[0].mxu0
      %v1243 = vadd.f32 0.0, %v1242
      %v1244 = vpop.f32.mrb[0].mxu0
      %v1245 = vadd.f32 0.0, %v1244
      %1246 = vdwg.mxu0
      %1247 = vmatprep.subr.mxu0 0.0
      %1248 = vmatpush1.msra.mxu0 %v1174
      %1249 = vmatprep.subr.mxu0 0.0
      %1250 = vmatpush1.msra.mxu0 0.0
      %1251 = vmatprep.subr.mxu0 0.0
      %1252 = vmatpush1.msra.mxu0 0.0
      %1253 = vmatprep.subr.mxu0 0.0
      %1254 = vmatpush1.msra.mxu0 0.0
      %1255 = vmatprep.subr.mxu0 0.0
      %1256 = vmatpush1.msra.mxu0 0.0
      %1257 = vmatprep.subr.mxu0 0.0
      %1258 = vmatpush1.msra.mxu0 0.0
      %1259 = vmatprep.subr.mxu0 0.0
      %1260 = vmatpush1.msra.mxu0 0.0
      %1261 = vmatprep.subr.mxu0 0.0
      %1262 = vmatpush1.msra.mxu0 0.0
      %1263 = vmatprep.subr.mxu0 0.0
      %1264 = vmatpush1.msra.mxu0 0.0
      %1265 = vmatprep.subr.mxu0 0.0
      %1266 = vmatpush1.msra.mxu0 0.0
      %1267 = vmatprep.subr.mxu0 0.0
      %1268 = vmatpush1.msra.mxu0 0.0
      %1269 = vmatprep.subr.mxu0 0.0
      %1270 = vmatpush1.msra.mxu0 0.0
      %1271 = vmatprep.subr.mxu0 0.0
      %1272 = vmatpush1.msra.mxu0 0.0
      %1273 = vmatprep.subr.mxu0 0.0
      %1274 = vmatpush1.msra.mxu0 0.0
      %1275 = vmatprep.subr.mxu0 0.0
      %1276 = vmatpush1.msra.mxu0 0.0
      %1277 = vmatprep.subr.mxu0 0.0
      %1278 = vmatpush1.msra.mxu0 0.0
      %1279 = vmatprep.subr.mxu0 0.0
      %1280 = vmatpush1.msra.mxu0 0.0
      %1281 = vmatprep.subr.mxu0 0.0
      %1282 = vmatpush1.msra.mxu0 0.0
      %1283 = vmatprep.subr.mxu0 0.0
      %1284 = vmatpush1.msra.mxu0 0.0
      %1285 = vmatprep.subr.mxu0 0.0
      %1286 = vmatpush1.msra.mxu0 0.0
      %1287 = vmatprep.subr.mxu0 0.0
      %1288 = vmatpush1.msra.mxu0 0.0
      %1289 = vmatprep.subr.mxu0 0.0
      %1290 = vmatpush1.msra.mxu0 0.0
      %1291 = vmatprep.subr.mxu0 0.0
      %1292 = vmatpush1.msra.mxu0 0.0
      %1293 = vmatprep.subr.mxu0 0.0
      %1294 = vmatpush1.msra.mxu0 0.0
      %1295 = vmatprep.subr.mxu0 0.0
      %1296 = vmatpush1.msra.mxu0 0.0
      %1297 = vmatprep.subr.mxu0 0.0
      %1298 = vmatpush1.msra.mxu0 0.0
      %1299 = vmatprep.subr.mxu0 0.0
      %1300 = vmatpush1.msra.mxu0 0.0
      %1301 = vmatprep.subr.mxu0 0.0
      %1302 = vmatpush1.msra.mxu0 0.0
      %1303 = vmatprep.subr.mxu0 0.0
      %1304 = vmatpush1.msra.mxu0 0.0
      %1305 = vmatprep.subr.mxu0 0.0
      %1306 = vmatpush1.msra.mxu0 0.0
      %1307 = vmatprep.subr.mxu0 0.0
      %1308 = vmatpush1.msra.mxu0 0.0
      %1309 = vmatprep.subr.mxu0 0.0
      %1310 = vmatpush1.msra.mxu0 0.0
      %1311 = vmatprep.mubr.f32.mxu0 0.0
      %1312 = vmatmul.mubr.f32.gmra.mrb[0].mxu0 %v1168
      %v1313 = vpop.f32.mrb[0].mxu0
      %v1314 = vadd.f32 0.0, %v1313
      %v1315 = vpop.f32.mrb[0].mxu0
      %1316 = vdwg.mxu0
      %v1317 = vadd.f32 %v1144, %v1243
      %v1318 = vadd.f32 %v1145, %v1245
      %v1319 = vadd.f32 %v1146, %v1314
      %s1320 = scalar_lea.vmem %s2, 48
      %v1321 = vld [vmem:[%s1320] sm:$0xff]
      %v1322 = vld [vmem:[#allocation2] sm:$0xff]
      %v1323 = vld [vmem:[#allocation2 + $0x8] sm:$0xff]
      %v1326 = vcombine.high %v1322, %v1322
      %v1327 = vcombine.high %v1323, %v1323
      %1328 = vrot.lane.b32.xlu0 %v1322, 92
      %v1329 = vpop.permute.xlu0 %1328
      %1330 = vrot.lane.b32.xlu0 %v1326, 92
      %v1331 = vpop.permute.xlu0 %1330
      %1332 = vrot.lane.b32.xlu0 %v1323, 92
      %v1333 = vpop.permute.xlu0 %1332
      %1334 = vrot.lane.b32.xlu0 %v1327, 92
      %v1335 = vpop.permute.xlu0 %1334
      %vm1336 = vcmask 752640
      %v1337 = vsel %vm1336, %v1329, %v1331
      %v1338 = vsel %vm1336, %v1331, %v1333
      %v1339 = vsel %vm1336, %v1333, %v1335
      %v1341 = vsel %vm300, %v1321, 0
      %v1343 = vsel %vm304, %v1337, 0
      %v1345 = vsel %vm304, %v1338, 0
      %v1347 = vsel %vm304, %v1339, 0
      %1349 = vmatprep.subr.mxu0 %v1345
      %1350 = vmatpush1.msra.mxu0 %v1343
      %1351 = vmatprep.subr.mxu0 0.0
      %1352 = vmatpush1.msra.mxu0 0.0
      %1353 = vmatprep.subr.mxu0 0.0
      %1354 = vmatpush1.msra.mxu0 0.0
      %1355 = vmatprep.subr.mxu0 0.0
      %1356 = vmatpush1.msra.mxu0 0.0
      %1357 = vmatprep.subr.mxu0 0.0
      %1358 = vmatpush1.msra.mxu0 0.0
      %1359 = vmatprep.subr.mxu0 0.0
      %1360 = vmatpush1.msra.mxu0 0.0
      %1361 = vmatprep.subr.mxu0 0.0
      %1362 = vmatpush1.msra.mxu0 0.0
      %1363 = vmatprep.subr.mxu0 0.0
      %1364 = vmatpush1.msra.mxu0 0.0
      %1365 = vmatprep.subr.mxu0 0.0
      %1366 = vmatpush1.msra.mxu0 0.0
      %1367 = vmatprep.subr.mxu0 0.0
      %1368 = vmatpush1.msra.mxu0 0.0
      %1369 = vmatprep.subr.mxu0 0.0
      %1370 = vmatpush1.msra.mxu0 0.0
      %1371 = vmatprep.subr.mxu0 0.0
      %1372 = vmatpush1.msra.mxu0 0.0
      %1373 = vmatprep.subr.mxu0 0.0
      %1374 = vmatpush1.msra.mxu0 0.0
      %1375 = vmatprep.subr.mxu0 0.0
      %1376 = vmatpush1.msra.mxu0 0.0
      %1377 = vmatprep.subr.mxu0 0.0
      %1378 = vmatpush1.msra.mxu0 0.0
      %1379 = vmatprep.subr.mxu0 0.0
      %1380 = vmatpush1.msra.mxu0 0.0
      %1381 = vmatprep.subr.mxu0 0.0
      %1382 = vmatpush1.msra.mxu0 0.0
      %1383 = vmatprep.subr.mxu0 0.0
      %1384 = vmatpush1.msra.mxu0 0.0
      %1385 = vmatprep.subr.mxu0 0.0
      %1386 = vmatpush1.msra.mxu0 0.0
      %1387 = vmatprep.subr.mxu0 0.0
      %1388 = vmatpush1.msra.mxu0 0.0
      %1389 = vmatprep.subr.mxu0 0.0
      %1390 = vmatpush1.msra.mxu0 0.0
      %1391 = vmatprep.subr.mxu0 0.0
      %1392 = vmatpush1.msra.mxu0 0.0
      %1393 = vmatprep.subr.mxu0 0.0
      %1394 = vmatpush1.msra.mxu0 0.0
      %1395 = vmatprep.subr.mxu0 0.0
      %1396 = vmatpush1.msra.mxu0 0.0
      %1397 = vmatprep.subr.mxu0 0.0
      %1398 = vmatpush1.msra.mxu0 0.0
      %1399 = vmatprep.subr.mxu0 0.0
      %1400 = vmatpush1.msra.mxu0 0.0
      %1401 = vmatprep.subr.mxu0 0.0
      %1402 = vmatpush1.msra.mxu0 0.0
      %1403 = vmatprep.subr.mxu0 0.0
      %1404 = vmatpush1.msra.mxu0 0.0
      %1405 = vmatprep.subr.mxu0 0.0
      %1406 = vmatpush1.msra.mxu0 0.0
      %1407 = vmatprep.subr.mxu0 0.0
      %1408 = vmatpush1.msra.mxu0 0.0
      %1409 = vmatprep.subr.mxu0 0.0
      %1410 = vmatpush1.msra.mxu0 0.0
      %1411 = vmatprep.subr.mxu0 0.0
      %1412 = vmatpush1.msra.mxu0 0.0
      %1413 = vmatprep.mubr.f32.mxu0 0.0
      %1414 = vmatmul.mubr.f32.gmra.mrb[0].mxu0 %v1341
      %v1415 = vpop.f32.mrb[0].mxu0
      %v1416 = vadd.f32 0.0, %v1415
      %v1417 = vpop.f32.mrb[0].mxu0
      %v1418 = vadd.f32 0.0, %v1417
      %1419 = vdwg.mxu0
      %1420 = vmatprep.subr.mxu0 0.0
      %1421 = vmatpush1.msra.mxu0 %v1347
      %1422 = vmatprep.subr.mxu0 0.0
      %1423 = vmatpush1.msra.mxu0 0.0
      %1424 = vmatprep.subr.mxu0 0.0
      %1425 = vmatpush1.msra.mxu0 0.0
      %1426 = vmatprep.subr.mxu0 0.0
      %1427 = vmatpush1.msra.mxu0 0.0
      %1428 = vmatprep.subr.mxu0 0.0
      %1429 = vmatpush1.msra.mxu0 0.0
      %1430 = vmatprep.subr.mxu0 0.0
      %1431 = vmatpush1.msra.mxu0 0.0
      %1432 = vmatprep.subr.mxu0 0.0
      %1433 = vmatpush1.msra.mxu0 0.0
      %1434 = vmatprep.subr.mxu0 0.0
      %1435 = vmatpush1.msra.mxu0 0.0
      %1436 = vmatprep.subr.mxu0 0.0
      %1437 = vmatpush1.msra.mxu0 0.0
      %1438 = vmatprep.subr.mxu0 0.0
      %1439 = vmatpush1.msra.mxu0 0.0
      %1440 = vmatprep.subr.mxu0 0.0
      %1441 = vmatpush1.msra.mxu0 0.0
      %1442 = vmatprep.subr.mxu0 0.0
      %1443 = vmatpush1.msra.mxu0 0.0
      %1444 = vmatprep.subr.mxu0 0.0
      %1445 = vmatpush1.msra.mxu0 0.0
      %1446 = vmatprep.subr.mxu0 0.0
      %1447 = vmatpush1.msra.mxu0 0.0
      %1448 = vmatprep.subr.mxu0 0.0
      %1449 = vmatpush1.msra.mxu0 0.0
      %1450 = vmatprep.subr.mxu0 0.0
      %1451 = vmatpush1.msra.mxu0 0.0
      %1452 = vmatprep.subr.mxu0 0.0
      %1453 = vmatpush1.msra.mxu0 0.0
      %1454 = vmatprep.subr.mxu0 0.0
      %1455 = vmatpush1.msra.mxu0 0.0
      %1456 = vmatprep.subr.mxu0 0.0
      %1457 = vmatpush1.msra.mxu0 0.0
      %1458 = vmatprep.subr.mxu0 0.0
      %1459 = vmatpush1.msra.mxu0 0.0
      %1460 = vmatprep.subr.mxu0 0.0
      %1461 = vmatpush1.msra.mxu0 0.0
      %1462 = vmatprep.subr.mxu0 0.0
      %1463 = vmatpush1.msra.mxu0 0.0
      %1464 = vmatprep.subr.mxu0 0.0
      %1465 = vmatpush1.msra.mxu0 0.0
      %1466 = vmatprep.subr.mxu0 0.0
      %1467 = vmatpush1.msra.mxu0 0.0
      %1468 = vmatprep.subr.mxu0 0.0
      %1469 = vmatpush1.msra.mxu0 0.0
      %1470 = vmatprep.subr.mxu0 0.0
      %1471 = vmatpush1.msra.mxu0 0.0
      %1472 = vmatprep.subr.mxu0 0.0
      %1473 = vmatpush1.msra.mxu0 0.0
      %1474 = vmatprep.subr.mxu0 0.0
      %1475 = vmatpush1.msra.mxu0 0.0
      %1476 = vmatprep.subr.mxu0 0.0
      %1477 = vmatpush1.msra.mxu0 0.0
      %1478 = vmatprep.subr.mxu0 0.0
      %1479 = vmatpush1.msra.mxu0 0.0
      %1480 = vmatprep.subr.mxu0 0.0
      %1481 = vmatpush1.msra.mxu0 0.0
      %1482 = vmatprep.subr.mxu0 0.0
      %1483 = vmatpush1.msra.mxu0 0.0
      %1484 = vmatprep.mubr.f32.mxu0 0.0
      %1485 = vmatmul.mubr.f32.gmra.mrb[0].mxu0 %v1341
      %v1486 = vpop.f32.mrb[0].mxu0
      %v1487 = vadd.f32 0.0, %v1486
      %v1488 = vpop.f32.mrb[0].mxu0
      %1489 = vdwg.mxu0
      %v1490 = vadd.f32 %v1317, %v1416
      %v1491 = vadd.f32 %v1318, %v1418
      %v1492 = vadd.f32 %v1319, %v1487
      %s1493 = scalar_lea.vmem %s2, 56
      %v1494 = vld [vmem:[%s1493] sm:$0xff]
      %v1495 = vld [vmem:[#allocation2] sm:$0xff]
      %v1496 = vld [vmem:[#allocation2 + $0x8] sm:$0xff]
      %v1499 = vcombine.high %v1495, %v1495
      %v1500 = vcombine.high %v1496, %v1496
      %1501 = vrot.lane.b32.xlu0 %v1495, 91
      %v1502 = vpop.permute.xlu0 %1501
      %1503 = vrot.lane.b32.xlu0 %v1499, 91
      %v1504 = vpop.permute.xlu0 %1503
      %1505 = vrot.lane.b32.xlu0 %v1496, 91
      %v1506 = vpop.permute.xlu0 %1505
      %1507 = vrot.lane.b32.xlu0 %v1500, 91
      %v1508 = vpop.permute.xlu0 %1507
      %vm1509 = vcmask 744448
      %v1510 = vsel %vm1509, %v1502, %v1504
      %v1511 = vsel %vm1509, %v1504, %v1506
      %v1512 = vsel %vm1509, %v1506, %v1508
      %v1514 = vsel %vm300, %v1494, 0
      %v1516 = vsel %vm304, %v1510, 0
      %v1518 = vsel %vm304, %v1511, 0
      %v1520 = vsel %vm304, %v1512, 0
      %1522 = vmatprep.subr.mxu0 %v1518
      %1523 = vmatpush1.msra.mxu0 %v1516
      %1524 = vmatprep.subr.mxu0 0.0
      %1525 = vmatpush1.msra.mxu0 0.0
      %1526 = vmatprep.subr.mxu0 0.0
      %1527 = vmatpush1.msra.mxu0 0.0
      %1528 = vmatprep.subr.mxu0 0.0
      %1529 = vmatpush1.msra.mxu0 0.0
      %1530 = vmatprep.subr.mxu0 0.0
      %1531 = vmatpush1.msra.mxu0 0.0
      %1532 = vmatprep.subr.mxu0 0.0
      %1533 = vmatpush1.msra.mxu0 0.0
      %1534 = vmatprep.subr.mxu0 0.0
      %1535 = vmatpush1.msra.mxu0 0.0
      %1536 = vmatprep.subr.mxu0 0.0
      %1537 = vmatpush1.msra.mxu0 0.0
      %1538 = vmatprep.subr.mxu0 0.0
      %1539 = vmatpush1.msra.mxu0 0.0
      %1540 = vmatprep.subr.mxu0 0.0
      %1541 = vmatpush1.msra.mxu0 0.0
      %1542 = vmatprep.subr.mxu0 0.0
      %1543 = vmatpush1.msra.mxu0 0.0
      %1544 = vmatprep.subr.mxu0 0.0
      %1545 = vmatpush1.msra.mxu0 0.0
      %1546 = vmatprep.subr.mxu0 0.0
      %1547 = vmatpush1.msra.mxu0 0.0
      %1548 = vmatprep.subr.mxu0 0.0
      %1549 = vmatpush1.msra.mxu0 0.0
      %1550 = vmatprep.subr.mxu0 0.0
      %1551 = vmatpush1.msra.mxu0 0.0
      %1552 = vmatprep.subr.mxu0 0.0
      %1553 = vmatpush1.msra.mxu0 0.0
      %1554 = vmatprep.subr.mxu0 0.0
      %1555 = vmatpush1.msra.mxu0 0.0
      %1556 = vmatprep.subr.mxu0 0.0
      %1557 = vmatpush1.msra.mxu0 0.0
      %1558 = vmatprep.subr.mxu0 0.0
      %1559 = vmatpush1.msra.mxu0 0.0
      %1560 = vmatprep.subr.mxu0 0.0
      %1561 = vmatpush1.msra.mxu0 0.0
      %1562 = vmatprep.subr.mxu0 0.0
      %1563 = vmatpush1.msra.mxu0 0.0
      %1564 = vmatprep.subr.mxu0 0.0
      %1565 = vmatpush1.msra.mxu0 0.0
      %1566 = vmatprep.subr.mxu0 0.0
      %1567 = vmatpush1.msra.mxu0 0.0
      %1568 = vmatprep.subr.mxu0 0.0
      %1569 = vmatpush1.msra.mxu0 0.0
      %1570 = vmatprep.subr.mxu0 0.0
      %1571 = vmatpush1.msra.mxu0 0.0
      %1572 = vmatprep.subr.mxu0 0.0
      %1573 = vmatpush1.msra.mxu0 0.0
      %1574 = vmatprep.subr.mxu0 0.0
      %1575 = vmatpush1.msra.mxu0 0.0
      %1576 = vmatprep.subr.mxu0 0.0
      %1577 = vmatpush1.msra.mxu0 0.0
      %1578 = vmatprep.subr.mxu0 0.0
      %1579 = vmatpush1.msra.mxu0 0.0
      %1580 = vmatprep.subr.mxu0 0.0
      %1581 = vmatpush1.msra.mxu0 0.0
      %1582 = vmatprep.subr.mxu0 0.0
      %1583 = vmatpush1.msra.mxu0 0.0
      %1584 = vmatprep.subr.mxu0 0.0
      %1585 = vmatpush1.msra.mxu0 0.0
      %1586 = vmatprep.mubr.f32.mxu0 0.0
      %1587 = vmatmul.mubr.f32.gmra.mrb[0].mxu0 %v1514
      %v1588 = vpop.f32.mrb[0].mxu0
      %v1589 = vadd.f32 0.0, %v1588
      %v1590 = vpop.f32.mrb[0].mxu0
      %v1591 = vadd.f32 0.0, %v1590
      %1592 = vdwg.mxu0
      %1593 = vmatprep.subr.mxu0 0.0
      %1594 = vmatpush1.msra.mxu0 %v1520
      %1595 = vmatprep.subr.mxu0 0.0
      %1596 = vmatpush1.msra.mxu0 0.0
      %1597 = vmatprep.subr.mxu0 0.0
      %1598 = vmatpush1.msra.mxu0 0.0
      %1599 = vmatprep.subr.mxu0 0.0
      %1600 = vmatpush1.msra.mxu0 0.0
      %1601 = vmatprep.subr.mxu0 0.0
      %1602 = vmatpush1.msra.mxu0 0.0
      %1603 = vmatprep.subr.mxu0 0.0
      %1604 = vmatpush1.msra.mxu0 0.0
      %1605 = vmatprep.subr.mxu0 0.0
      %1606 = vmatpush1.msra.mxu0 0.0
      %1607 = vmatprep.subr.mxu0 0.0
      %1608 = vmatpush1.msra.mxu0 0.0
      %1609 = vmatprep.subr.mxu0 0.0
      %1610 = vmatpush1.msra.mxu0 0.0
      %1611 = vmatprep.subr.mxu0 0.0
      %1612 = vmatpush1.msra.mxu0 0.0
      %1613 = vmatprep.subr.mxu0 0.0
      %1614 = vmatpush1.msra.mxu0 0.0
      %1615 = vmatprep.subr.mxu0 0.0
      %1616 = vmatpush1.msra.mxu0 0.0
      %1617 = vmatprep.subr.mxu0 0.0
      %1618 = vmatpush1.msra.mxu0 0.0
      %1619 = vmatprep.subr.mxu0 0.0
      %1620 = vmatpush1.msra.mxu0 0.0
      %1621 = vmatprep.subr.mxu0 0.0
      %1622 = vmatpush1.msra.mxu0 0.0
      %1623 = vmatprep.subr.mxu0 0.0
      %1624 = vmatpush1.msra.mxu0 0.0
      %1625 = vmatprep.subr.mxu0 0.0
      %1626 = vmatpush1.msra.mxu0 0.0
      %1627 = vmatprep.subr.mxu0 0.0
      %1628 = vmatpush1.msra.mxu0 0.0
      %1629 = vmatprep.subr.mxu0 0.0
      %1630 = vmatpush1.msra.mxu0 0.0
      %1631 = vmatprep.subr.mxu0 0.0
      %1632 = vmatpush1.msra.mxu0 0.0
      %1633 = vmatprep.subr.mxu0 0.0
      %1634 = vmatpush1.msra.mxu0 0.0
      %1635 = vmatprep.subr.mxu0 0.0
      %1636 = vmatpush1.msra.mxu0 0.0
      %1637 = vmatprep.subr.mxu0 0.0
      %1638 = vmatpush1.msra.mxu0 0.0
      %1639 = vmatprep.subr.mxu0 0.0
      %1640 = vmatpush1.msra.mxu0 0.0
      %1641 = vmatprep.subr.mxu0 0.0
      %1642 = vmatpush1.msra.mxu0 0.0
      %1643 = vmatprep.subr.mxu0 0.0
      %1644 = vmatpush1.msra.mxu0 0.0
      %1645 = vmatprep.subr.mxu0 0.0
      %1646 = vmatpush1.msra.mxu0 0.0
      %1647 = vmatprep.subr.mxu0 0.0
      %1648 = vmatpush1.msra.mxu0 0.0
      %1649 = vmatprep.subr.mxu0 0.0
      %1650 = vmatpush1.msra.mxu0 0.0
      %1651 = vmatprep.subr.mxu0 0.0
      %1652 = vmatpush1.msra.mxu0 0.0
      %1653 = vmatprep.subr.mxu0 0.0
      %1654 = vmatpush1.msra.mxu0 0.0
      %1655 = vmatprep.subr.mxu0 0.0
      %1656 = vmatpush1.msra.mxu0 0.0
      %1657 = vmatprep.mubr.f32.mxu0 0.0
      %1658 = vmatmul.mubr.f32.gmra.mrb[0].mxu0 %v1514
      %v1659 = vpop.f32.mrb[0].mxu0
      %v1660 = vadd.f32 0.0, %v1659
      %v1661 = vpop.f32.mrb[0].mxu0
      %1662 = vdwg.mxu0
      %v1663 = vadd.f32 %v1490, %v1589
      %v1664 = vadd.f32 %v1491, %v1591
      %v1665 = vadd.f32 %v1492, %v1660
      %s1666 = scalar_lea.vmem %s2, 64
      %v1667 = vld [vmem:[%s1666] sm:$0xff]
      %v1668 = vld [vmem:[#allocation2] sm:$0xff]
      %v1669 = vld [vmem:[#allocation2 + $0x8] sm:$0xff]
      %v1672 = vcombine.high %v1668, %v1668
      %v1673 = vcombine.high %v1669, %v1669
      %1674 = vrot.lane.b32.xlu0 %v1668, 90
      %v1675 = vpop.permute.xlu0 %1674
      %1676 = vrot.lane.b32.xlu0 %v1672, 90
      %v1677 = vpop.permute.xlu0 %1676
      %1678 = vrot.lane.b32.xlu0 %v1669, 90
      %v1679 = vpop.permute.xlu0 %1678
      %1680 = vrot.lane.b32.xlu0 %v1673, 90
      %v1681 = vpop.permute.xlu0 %1680
      %vm1682 = vcmask 736256
      %v1683 = vsel %vm1682, %v1675, %v1677
      %v1684 = vsel %vm1682, %v1677, %v1679
      %v1685 = vsel %vm1682, %v1679, %v1681
      %v1687 = vsel %vm300, %v1667, 0
      %v1689 = vsel %vm304, %v1683, 0
      %v1691 = vsel %vm304, %v1684, 0
      %v1693 = vsel %vm304, %v1685, 0
      %1695 = vmatprep.subr.mxu0 %v1691
      %1696 = vmatpush1.msra.mxu0 %v1689
      %1697 = vmatprep.subr.mxu0 0.0
      %1698 = vmatpush1.msra.mxu0 0.0
      %1699 = vmatprep.subr.mxu0 0.0
      %1700 = vmatpush1.msra.mxu0 0.0
      %1701 = vmatprep.subr.mxu0 0.0
      %1702 = vmatpush1.msra.mxu0 0.0
      %1703 = vmatprep.subr.mxu0 0.0
      %1704 = vmatpush1.msra.mxu0 0.0
      %1705 = vmatprep.subr.mxu0 0.0
      %1706 = vmatpush1.msra.mxu0 0.0
      %1707 = vmatprep.subr.mxu0 0.0
      %1708 = vmatpush1.msra.mxu0 0.0
      %1709 = vmatprep.subr.mxu0 0.0
      %1710 = vmatpush1.msra.mxu0 0.0
      %1711 = vmatprep.subr.mxu0 0.0
      %1712 = vmatpush1.msra.mxu0 0.0
      %1713 = vmatprep.subr.mxu0 0.0
      %1714 = vmatpush1.msra.mxu0 0.0
      %1715 = vmatprep.subr.mxu0 0.0
      %1716 = vmatpush1.msra.mxu0 0.0
      %1717 = vmatprep.subr.mxu0 0.0
      %1718 = vmatpush1.msra.mxu0 0.0
      %1719 = vmatprep.subr.mxu0 0.0
      %1720 = vmatpush1.msra.mxu0 0.0
      %1721 = vmatprep.subr.mxu0 0.0
      %1722 = vmatpush1.msra.mxu0 0.0
      %1723 = vmatprep.subr.mxu0 0.0
      %1724 = vmatpush1.msra.mxu0 0.0
      %1725 = vmatprep.subr.mxu0 0.0
      %1726 = vmatpush1.msra.mxu0 0.0
      %1727 = vmatprep.subr.mxu0 0.0
      %1728 = vmatpush1.msra.mxu0 0.0
      %1729 = vmatprep.subr.mxu0 0.0
      %1730 = vmatpush1.msra.mxu0 0.0
      %1731 = vmatprep.subr.mxu0 0.0
      %1732 = vmatpush1.msra.mxu0 0.0
      %1733 = vmatprep.subr.mxu0 0.0
      %1734 = vmatpush1.msra.mxu0 0.0
      %1735 = vmatprep.subr.mxu0 0.0
      %1736 = vmatpush1.msra.mxu0 0.0
      %1737 = vmatprep.subr.mxu0 0.0
      %1738 = vmatpush1.msra.mxu0 0.0
      %1739 = vmatprep.subr.mxu0 0.0
      %1740 = vmatpush1.msra.mxu0 0.0
      %1741 = vmatprep.subr.mxu0 0.0
      %1742 = vmatpush1.msra.mxu0 0.0
      %1743 = vmatprep.subr.mxu0 0.0
      %1744 = vmatpush1.msra.mxu0 0.0
      %1745 = vmatprep.subr.mxu0 0.0
      %1746 = vmatpush1.msra.mxu0 0.0
      %1747 = vmatprep.subr.mxu0 0.0
      %1748 = vmatpush1.msra.mxu0 0.0
      %1749 = vmatprep.subr.mxu0 0.0
      %1750 = vmatpush1.msra.mxu0 0.0
      %1751 = vmatprep.subr.mxu0 0.0
      %1752 = vmatpush1.msra.mxu0 0.0
      %1753 = vmatprep.subr.mxu0 0.0
      %1754 = vmatpush1.msra.mxu0 0.0
      %1755 = vmatprep.subr.mxu0 0.0
      %1756 = vmatpush1.msra.mxu0 0.0
      %1757 = vmatprep.subr.mxu0 0.0
      %1758 = vmatpush1.msra.mxu0 0.0
      %1759 = vmatprep.mubr.f32.mxu0 0.0
      %1760 = vmatmul.mubr.f32.gmra.mrb[0].mxu0 %v1687
      %v1761 = vpop.f32.mrb[0].mxu0
      %v1762 = vadd.f32 0.0, %v1761
      %v1763 = vpop.f32.mrb[0].mxu0
      %v1764 = vadd.f32 0.0, %v1763
      %1765 = vdwg.mxu0
      %1766 = vmatprep.subr.mxu0 0.0
      %1767 = vmatpush1.msra.mxu0 %v1693
      %1768 = vmatprep.subr.mxu0 0.0
      %1769 = vmatpush1.msra.mxu0 0.0
      %1770 = vmatprep.subr.mxu0 0.0
      %1771 = vmatpush1.msra.mxu0 0.0
      %1772 = vmatprep.subr.mxu0 0.0
      %1773 = vmatpush1.msra.mxu0 0.0
      %1774 = vmatprep.subr.mxu0 0.0
      %1775 = vmatpush1.msra.mxu0 0.0
      %1776 = vmatprep.subr.mxu0 0.0
      %1777 = vmatpush1.msra.mxu0 0.0
      %1778 = vmatprep.subr.mxu0 0.0
      %1779 = vmatpush1.msra.mxu0 0.0
      %1780 = vmatprep.subr.mxu0 0.0
      %1781 = vmatpush1.msra.mxu0 0.0
      %1782 = vmatprep.subr.mxu0 0.0
      %1783 = vmatpush1.msra.mxu0 0.0
      %1784 = vmatprep.subr.mxu0 0.0
      %1785 = vmatpush1.msra.mxu0 0.0
      %1786 = vmatprep.subr.mxu0 0.0
      %1787 = vmatpush1.msra.mxu0 0.0
      %1788 = vmatprep.subr.mxu0 0.0
      %1789 = vmatpush1.msra.mxu0 0.0
      %1790 = vmatprep.subr.mxu0 0.0
      %1791 = vmatpush1.msra.mxu0 0.0
      %1792 = vmatprep.subr.mxu0 0.0
      %1793 = vmatpush1.msra.mxu0 0.0
      %1794 = vmatprep.subr.mxu0 0.0
      %1795 = vmatpush1.msra.mxu0 0.0
      %1796 = vmatprep.subr.mxu0 0.0
      %1797 = vmatpush1.msra.mxu0 0.0
      %1798 = vmatprep.subr.mxu0 0.0
      %1799 = vmatpush1.msra.mxu0 0.0
      %1800 = vmatprep.subr.mxu0 0.0
      %1801 = vmatpush1.msra.mxu0 0.0
      %1802 = vmatprep.subr.mxu0 0.0
      %1803 = vmatpush1.msra.mxu0 0.0
      %1804 = vmatprep.subr.mxu0 0.0
      %1805 = vmatpush1.msra.mxu0 0.0
      %1806 = vmatprep.subr.mxu0 0.0
      %1807 = vmatpush1.msra.mxu0 0.0
      %1808 = vmatprep.subr.mxu0 0.0
      %1809 = vmatpush1.msra.mxu0 0.0
      %1810 = vmatprep.subr.mxu0 0.0
      %1811 = vmatpush1.msra.mxu0 0.0
      %1812 = vmatprep.subr.mxu0 0.0
      %1813 = vmatpush1.msra.mxu0 0.0
      %1814 = vmatprep.subr.mxu0 0.0
      %1815 = vmatpush1.msra.mxu0 0.0
      %1816 = vmatprep.subr.mxu0 0.0
      %1817 = vmatpush1.msra.mxu0 0.0
      %1818 = vmatprep.subr.mxu0 0.0
      %1819 = vmatpush1.msra.mxu0 0.0
      %1820 = vmatprep.subr.mxu0 0.0
      %1821 = vmatpush1.msra.mxu0 0.0
      %1822 = vmatprep.subr.mxu0 0.0
      %1823 = vmatpush1.msra.mxu0 0.0
      %1824 = vmatprep.subr.mxu0 0.0
      %1825 = vmatpush1.msra.mxu0 0.0
      %1826 = vmatprep.subr.mxu0 0.0
      %1827 = vmatpush1.msra.mxu0 0.0
      %1828 = vmatprep.subr.mxu0 0.0
      %1829 = vmatpush1.msra.mxu0 0.0
      %1830 = vmatprep.mubr.f32.mxu0 0.0
      %1831 = vmatmul.mubr.f32.gmra.mrb[0].mxu0 %v1687
      %v1832 = vpop.f32.mrb[0].mxu0
      %v1833 = vadd.f32 0.0, %v1832
      %v1834 = vpop.f32.mrb[0].mxu0
      %1835 = vdwg.mxu0
      %v1836 = vadd.f32 %v1663, %v1762
      %v1837 = vadd.f32 %v1664, %v1764
      %v1838 = vadd.f32 %v1665, %v1833
      %1839 = vst [vmem:[%s278] sm:$0xff] %v1836
      %1840 = vst [vmem:[%s278 + $0x8] sm:$0xff] %v1837
      %1841 = vst [vmem:[%s278 + $0x10] sm:$0xff] %v1838
      %s1842 = smul.u32 3, %s20
      %p1843 = scmp.lt.s32.totalorder %s19, 1
      %s1844 = scalar_select %p1843, %s19, 1
      %p1845 = scmp.lt.s32.totalorder %s1842, 2
      %s1846 = scalar_select %p1845, %s1842, 2
      %s1847 = smul.addr %s1844, 3
      %s1848 = sadd.s32 %s1846, %s1847
      %s1849 = smul.addr %s1848, 8
      %s1850 = scalar_lea.vmem %s4, %s1849
      // Predicated region
      $region37: #{dconv2d_pallas.1} parent=35 // pred_check
        %p1851 = pneg %p147
      $region38: #{dconv2d_pallas.1} parent=35 // pred_check_branch
        %1853 = sbr.rel (%p1851) target = $region40
      $region39: #{dconv2d_pallas.1} parent=35 // pred_region
        %s1854 = smul.u32 3, %s20
      $region40: #{dconv2d_pallas.1} parent=35 // pred_fallthru
        _
    $region36: #{dconv2d_pallas.1} parent=5 // pred_fallthru
      _
    %p1855 = scmp.le.s32.totalorder 2, %s10
    // Predicated region
    $region41: #{dconv2d_pallas.1} parent=5 // pred_check
      %p1856 = pneg %p1855
    $region42: #{dconv2d_pallas.1} parent=5 // pred_check_branch
      %1858 = sbr.rel (%p1856) target = $region44
    $region43: #{dconv2d_pallas.1} parent=5 // pred_region
      %s1859 = ssub.s32 %s10, 2
      // Predicated region
      $region45: #{dconv2d_pallas.1} parent=43 // pred_check
        %p1860 = pneg %p153
      $region46: #{dconv2d_pallas.1} parent=43 // pred_check_branch
        %1862 = sbr.rel (%p1860) target = $region48
      $region47: #{dconv2d_pallas.1} parent=43 // pred_region
        %s1863 = smul.u32 3, %s22
        %p1864 = scmp.lt.s32.totalorder %s21, 1
        %s1865 = scalar_select %p1864, %s21, 1
        %p1866 = scmp.lt.s32.totalorder %s1863, 2
        %s1867 = scalar_select %p1866, %s1863, 2
        %s1868 = smul.addr %s1865, 3
        %s1869 = sadd.s32 %s1867, %s1868
        %s1870 = smul.addr %s1869, 8
        %s1871 = scalar_lea.vmem %s4, %s1870
      $region48: #{dconv2d_pallas.1} parent=43 // pred_fallthru
        _
    $region44: #{dconv2d_pallas.1} parent=5 // pred_fallthru
      _
  $region6: #{dconv2d_pallas.1} parent=0 // loop_footer
    %s14 = sadd.s32 1, %s10
  $region7: #{dconv2d_pallas.1} parent=0 // loop_footer_branch
    %9 = sbr.rel target = $region3
  $region8: #{dconv2d_pallas.1} parent=0 // loop_exit
    _

</llo_original>
